<compile_context>
chip_gen: v7x
topology: tpu7x:2x2x1
jax: 0.10.0
libtpu: 0.0.40
codegen_flags: <defaults>
</compile_context>

<pallas_src>
import functools

import jax
import jax.numpy as jnp
from jax.experimental import pallas as pl
from jax.experimental.pallas import tpu as pltpu

HIDDEN1 = 1024
HIDDEN2 = 256


def _round_up(n, m):
    return ((n + m - 1) // m) * m


def _mlp_kernel(x_ref, w1_ref, b1_ref, w2_ref, b2_ref, w3_ref, b3_ref, o_ref):
    # layer1: Linear (bf16 MXU, f32 accumulate) + bias/ReLU in f32, back to bf16
    h1 = jnp.dot(x_ref[...], w1_ref[...], preferred_element_type=jnp.float32)
    h1 = jnp.maximum(h1 + b1_ref[...], 0.0).astype(w2_ref.dtype)
    # layer2: Linear + ReLU
    h2 = jnp.dot(h1, w2_ref[...], preferred_element_type=jnp.float32)
    h2 = jnp.maximum(h2 + b2_ref[...], 0.0).astype(w3_ref.dtype)
    # layer3: Linear (no activation)
    out = jnp.dot(h2, w3_ref[...], preferred_element_type=jnp.float32)
    o_ref[...] = (out + b3_ref[...]).astype(o_ref.dtype)


@functools.partial(jax.jit, static_argnames=("batch_tile",))
def base_nn_forward(x, params, *, batch_tile=256):
    """Fused 3-layer MLP forward. x: (B, input_dim) f32. Returns (B, output_dim) f32."""
    w1, b1, w2, b2, w3, b3 = params
    B, d_in = x.shape
    d_out = w3.shape[1]

    # ---- static tiling decisions (shapes are static under jit) ----
    d_in_p = _round_up(d_in, 128)       # lane-aligned K for layer 1
    d_out_p = _round_up(d_out, 128)     # lane-dense output stores

    bt = min(batch_tile, _round_up(B, 8))
    bt = _round_up(bt, 8)
    # v7x megacore: when the batch is big enough, keep >= 2 grid steps so the
    # "parallel" axis actually shards across the two TensorCores.
    if B >= 256:
        bt = min(bt, _round_up(pl.cdiv(B, 2), 128))
    B_p = _round_up(B, bt)
    grid = (B_p // bt,)

    # ---- pad + cast inputs at the boundary (bf16 matmul operands, f32 biases) ----
    bf16 = jnp.bfloat16
    x_p = jnp.pad(x, ((0, B_p - B), (0, d_in_p - d_in))).astype(bf16)
    w1_p = jnp.pad(w1, ((0, d_in_p - d_in), (0, 0))).astype(bf16)
    w2_c = w2.astype(bf16)
    w3_p = jnp.pad(w3, ((0, 0), (0, d_out_p - d_out))).astype(bf16)
    b1_c = b1.astype(jnp.float32)
    b2_c = b2.astype(jnp.float32)
    b3_p = jnp.pad(b3, ((0, 0), (0, d_out_p - d_out))).astype(jnp.float32)

    # ---- explicit VMEM budget (weights kept whole, x/out tiles double-buffered) ----
    weight_bytes = ((w1_p.size + w2_c.size + w3_p.size) * 2 +
                    (b1_c.size + b2_c.size + b3_p.size) * 4)
    act_bytes = 2 * bt * d_in_p * 2 + 2 * bt * d_out_p * 4
    scratch_bytes = bt * (HIDDEN1 + HIDDEN2) * 6      # f32 + bf16 intermediates
    vmem_limit = int(1.5 * (2 * weight_bytes + act_bytes + scratch_bytes)) + (4 << 20)
    vmem_limit = min(max(vmem_limit, 16 << 20), 100 << 20)

    full = lambda i: (0, 0)
    in_specs = [
        pl.BlockSpec((bt, d_in_p), lambda i: (i, 0)),      # x tile
        pl.BlockSpec((d_in_p, HIDDEN1), full),             # w1 (whole)
        pl.BlockSpec((1, HIDDEN1), full),                  # b1
        pl.BlockSpec((HIDDEN1, HIDDEN2), full),            # w2
        pl.BlockSpec((1, HIDDEN2), full),                  # b2
        pl.BlockSpec((HIDDEN2, d_out_p), full),            # w3
        pl.BlockSpec((1, d_out_p), full),                  # b3
    ]
    out_spec = pl.BlockSpec((bt, d_out_p), lambda i: (i, 0))

    out_p = pl.pallas_call(
        _mlp_kernel,
        out_shape=jax.ShapeDtypeStruct((B_p, d_out_p), jnp.float32),
        grid_spec=pltpu.PrefetchScalarGridSpec(
            num_scalar_prefetch=0,
            grid=grid,
            in_specs=in_specs,
            out_specs=out_spec,
        ),
        compiler_params=pltpu.CompilerParams(
            dimension_semantics=("parallel",),
            vmem_limit_bytes=vmem_limit,
        ),
    )(x_p, w1_p, b1_c, w2_c, b2_c, w3_p, b3_p)

    # slice away batch / output-lane padding
    return out_p[:B, :d_out]


def init_params(key, input_dim, output_dim):
    """Deterministic PyTorch-Linear-style init: U(-1/sqrt(fan_in), 1/sqrt(fan_in))."""
    def linear(k, fan_in, fan_out):
        kw, kb = jax.random.split(k)
        bound = 1.0 / jnp.sqrt(fan_in)
        w = jax.random.uniform(kw, (fan_in, fan_out), jnp.float32, -bound, bound)
        b = jax.random.uniform(kb, (1, fan_out), jnp.float32, -bound, bound)
        return w, b

    k1, k2, k3 = jax.random.split(key, 3)
    w1, b1 = linear(k1, input_dim, HIDDEN1)
    w2, b2 = linear(k2, HIDDEN1, HIDDEN2)
    w3, b3 = linear(k3, HIDDEN2, output_dim)
    return (w1, b1, w2, b2, w3, b3)


def base_nn_reference_f32(x, params):
    """Pure-JAX f32 reference matching the PyTorch module."""
    w1, b1, w2, b2, w3, b3 = params
    h = jnp.maximum(x @ w1 + b1, 0.0)
    h = jnp.maximum(h @ w2 + b2, 0.0)
    return h @ w3 + b3


def base_nn_reference_mixed(x, params):
    """Pure-JAX reference with the same bf16-operand / f32-accumulate scheme as the kernel."""
    w1, b1, w2, b2, w3, b3 = params
    bf = jnp.bfloat16
    h = jnp.dot(x.astype(bf), w1.astype(bf), preferred_element_type=jnp.float32)
    h = jnp.maximum(h + b1, 0.0).astype(bf)
    h = jnp.dot(h, w2.astype(bf), preferred_element_type=jnp.float32)
    h = jnp.maximum(h + b2, 0.0).astype(bf)
    out = jnp.dot(h, w3.astype(bf), preferred_element_type=jnp.float32)
    return out + b3


if __name__ == "__main__":
    key = jax.random.PRNGKey(0)
    k_param, k_x = jax.random.split(key)

    input_dim = 32     # BaseNN(input_dim=32, output_dim=16)
    output_dim = 16
    batch = 64

    params = init_params(k_param, input_dim, output_dim)
    x = jax.random.normal(k_x, (batch, input_dim), jnp.float32)

    out = base_nn_forward(x, params)
    out = jax.block_until_ready(out)
    assert out.shape == (batch, output_dim), out.shape

    # Tight check against a reference that mirrors the kernel's precision scheme.
    ref_mixed = base_nn_reference_mixed(x, params)
    assert jnp.allclose(out, ref_mixed, atol=1e-3, rtol=1e-3), "mismatch vs mixed-precision reference"

    # Loose check against the full-f32 PyTorch-equivalent reference (bf16 operand rounding).
    ref_f32 = base_nn_reference_f32(x, params)
    assert jnp.allclose(out, ref_f32, atol=5e-2, rtol=5e-2), "mismatch vs f32 reference"

    print("KERNEL_OK")
</pallas_src>

<mosaic_0001>
module attributes {stable_mosaic.version = 11 : i64} {
  func.func @_mlp_kernel(%arg0: i32, %arg1: memref<64x128xbf16, #tpu.memory_space<vmem>>, %arg2: memref<128x1024xbf16, #tpu.memory_space<vmem>>, %arg3: memref<1x1024xf32, #tpu.memory_space<vmem>>, %arg4: memref<1024x256xbf16, #tpu.memory_space<vmem>>, %arg5: memref<1x256xf32, #tpu.memory_space<vmem>>, %arg6: memref<256x128xbf16, #tpu.memory_space<vmem>>, %arg7: memref<1x128xf32, #tpu.memory_space<vmem>>, %arg8: memref<64x128xf32, #tpu.memory_space<vmem>>) attributes {dimension_semantics = [#tpu.dimension_semantics<parallel>], iteration_bounds = array<i64: 1>, scalar_prefetch = 0 : i64, scratch_operands = 0 : i64, tpu.core_type = #tpu.core_type<tc>, window_params = [{transform_indices = @transform_0, window_bounds = array<i64: 64, 128>}, {pipeline_mode = #tpu.pipeline_mode<synchronous>, transform_indices = @transform_1, window_bounds = array<i64: 128, 1024>}, {pipeline_mode = #tpu.pipeline_mode<synchronous>, transform_indices = @transform_2, window_bounds = array<i64: 1, 1024>}, {pipeline_mode = #tpu.pipeline_mode<synchronous>, transform_indices = @transform_3, window_bounds = array<i64: 1024, 256>}, {pipeline_mode = #tpu.pipeline_mode<synchronous>, transform_indices = @transform_4, window_bounds = array<i64: 1, 256>}, {pipeline_mode = #tpu.pipeline_mode<synchronous>, transform_indices = @transform_5, window_bounds = array<i64: 256, 128>}, {pipeline_mode = #tpu.pipeline_mode<synchronous>, transform_indices = @transform_6, window_bounds = array<i64: 1, 128>}, {transform_indices = @transform_7, window_bounds = array<i64: 64, 128>}]} {
    %c0 = arith.constant 0 : index
    %c0_0 = arith.constant 0 : index
    %0 = vector.load %arg1[%c0, %c0_0] : memref<64x128xbf16, #tpu.memory_space<vmem>>, vector<64x128xbf16>
    %c0_1 = arith.constant 0 : index
    %c0_2 = arith.constant 0 : index
    %1 = vector.load %arg2[%c0_1, %c0_2] : memref<128x1024xbf16, #tpu.memory_space<vmem>>, vector<128x1024xbf16>
    %cst = arith.constant dense<0.000000e+00> : vector<64x1024xf32>
    %2 = tpu.matmul %0, %1, %cst {dimension_numbers = #tpu.dot_dimension_numbers<[1], [0], [0], [1], [0, 0, 1, 1], [], []>} : vector<64x128xbf16>, vector<128x1024xbf16>, vector<64x1024xf32> -> vector<64x1024xf32>
    %c0_3 = arith.constant 0 : index
    %c0_4 = arith.constant 0 : index
    %3 = vector.load %arg3[%c0_3, %c0_4] : memref<1x1024xf32, #tpu.memory_space<vmem>>, vector<1x1024xf32>
    %4 = vector.broadcast %3 : vector<1x1024xf32> to vector<64x1024xf32>
    %5 = arith.addf %2, %4 : vector<64x1024xf32>
    %cst_5 = arith.constant 0.000000e+00 : f32
    %6 = vector.broadcast %cst_5 : f32 to vector<64x1024xf32>
    %7 = arith.maximumf %5, %6 : vector<64x1024xf32>
    %8 = arith.truncf %7 : vector<64x1024xf32> to vector<64x1024xbf16>
    %c0_6 = arith.constant 0 : index
    %c0_7 = arith.constant 0 : index
    %9 = vector.load %arg4[%c0_6, %c0_7] : memref<1024x256xbf16, #tpu.memory_space<vmem>>, vector<1024x256xbf16>
    %cst_8 = arith.constant dense<0.000000e+00> : vector<64x256xf32>
    %10 = tpu.matmul %8, %9, %cst_8 {dimension_numbers = #tpu.dot_dimension_numbers<[1], [0], [0], [1], [0, 0, 1, 1], [], []>} : vector<64x1024xbf16>, vector<1024x256xbf16>, vector<64x256xf32> -> vector<64x256xf32>
    %c0_9 = arith.constant 0 : index
    %c0_10 = arith.constant 0 : index
    %11 = vector.load %arg5[%c0_9, %c0_10] : memref<1x256xf32, #tpu.memory_space<vmem>>, vector<1x256xf32>
    %12 = vector.broadcast %11 : vector<1x256xf32> to vector<64x256xf32>
    %13 = arith.addf %10, %12 : vector<64x256xf32>
    %cst_11 = arith.constant 0.000000e+00 : f32
    %14 = vector.broadcast %cst_11 : f32 to vector<64x256xf32>
    %15 = arith.maximumf %13, %14 : vector<64x256xf32>
    %16 = arith.truncf %15 : vector<64x256xf32> to vector<64x256xbf16>
    %c0_12 = arith.constant 0 : index
    %c0_13 = arith.constant 0 : index
    %17 = vector.load %arg6[%c0_12, %c0_13] : memref<256x128xbf16, #tpu.memory_space<vmem>>, vector<256x128xbf16>
    %cst_14 = arith.constant dense<0.000000e+00> : vector<64x128xf32>
    %18 = tpu.matmul %16, %17, %cst_14 {dimension_numbers = #tpu.dot_dimension_numbers<[1], [0], [0], [1], [0, 0, 1, 1], [], []>} : vector<64x256xbf16>, vector<256x128xbf16>, vector<64x128xf32> -> vector<64x128xf32>
    %c0_15 = arith.constant 0 : index
    %c0_16 = arith.constant 0 : index
    %19 = vector.load %arg7[%c0_15, %c0_16] : memref<1x128xf32, #tpu.memory_space<vmem>>, vector<1x128xf32>
    %20 = vector.broadcast %19 : vector<1x128xf32> to vector<64x128xf32>
    %21 = arith.addf %18, %20 : vector<64x128xf32>
    %c0_17 = arith.constant 0 : index
    %c0_18 = arith.constant 0 : index
    %22 = vector.load %arg8[%c0_17, %c0_18] : memref<64x128xf32, #tpu.memory_space<vmem>>, vector<64x128xf32>
    tpu.vector_store %arg8[%c0_17, %c0_18], %21 {strides = array<i32>} : memref<64x128xf32, #tpu.memory_space<vmem>>, vector<64x128xf32>,
    return
  }
  func.func @transform_0(%arg0: i32) -> (i32, i32) {
    %c0_i32 = arith.constant 0 : i32
    %c0_i32_0 = arith.constant 0 : i32
    return %arg0, %c0_i32 : i32, i32
  }
  func.func @transform_1(%arg0: i32) -> (i32, i32) {
    %c0_i32 = arith.constant 0 : i32
    %c0_i32_0 = arith.constant 0 : i32
    %c0_i32_1 = arith.constant 0 : i32
    return %c0_i32, %c0_i32_0 : i32, i32
  }
  func.func @transform_2(%arg0: i32) -> (i32, i32) {
    %c0_i32 = arith.constant 0 : i32
    %c0_i32_0 = arith.constant 0 : i32
    %c0_i32_1 = arith.constant 0 : i32
    return %c0_i32, %c0_i32_0 : i32, i32
  }
  func.func @transform_3(%arg0: i32) -> (i32, i32) {
    %c0_i32 = arith.constant 0 : i32
    %c0_i32_0 = arith.constant 0 : i32
    %c0_i32_1 = arith.constant 0 : i32
    return %c0_i32, %c0_i32_0 : i32, i32
  }
  func.func @transform_4(%arg0: i32) -> (i32, i32) {
    %c0_i32 = arith.constant 0 : i32
    %c0_i32_0 = arith.constant 0 : i32
    %c0_i32_1 = arith.constant 0 : i32
    return %c0_i32, %c0_i32_0 : i32, i32
  }
  func.func @transform_5(%arg0: i32) -> (i32, i32) {
    %c0_i32 = arith.constant 0 : i32
    %c0_i32_0 = arith.constant 0 : i32
    %c0_i32_1 = arith.constant 0 : i32
    return %c0_i32, %c0_i32_0 : i32, i32
  }
  func.func @transform_6(%arg0: i32) -> (i32, i32) {
    %c0_i32 = arith.constant 0 : i32
    %c0_i32_0 = arith.constant 0 : i32
    %c0_i32_1 = arith.constant 0 : i32
    return %c0_i32, %c0_i32_0 : i32, i32
  }
  func.func @transform_7(%arg0: i32) -> (i32, i32) {
    %c0_i32 = arith.constant 0 : i32
    %c0_i32_0 = arith.constant 0 : i32
    return %arg0, %c0_i32 : i32, i32
  }
}

</mosaic_0001>

<llo_original>
// kernel: base_nn_forward.1
$region0: #{base_nn_forward.1}
  #allocation0 [shape = 'u32[]', space=smem, size = 0x4, offset = 0x4, fixed_abs, tag = 'smem constant byte address 0x4 - core index']
  #allocation1 [shape = 'u32[144,128]{1,0:T(1,128)}', space=vmem, size = 0x12000, scoped, tag = 'internal scratch']
  %s0 = inlined_call_operand.vmem [shape: bf16[64,128], index: 0, kind: input, shape index: {}]
  %s1 = inlined_call_operand.vmem [shape: bf16[128,1024], index: 1, kind: input, shape index: {}]
  %s2 = inlined_call_operand.vmem [shape: f32[1,1024], index: 2, kind: input, shape index: {}]
  %s3 = inlined_call_operand.vmem [shape: bf16[1024,256], index: 3, kind: input, shape index: {}]
  %s4 = inlined_call_operand.vmem [shape: f32[1,256], index: 4, kind: input, shape index: {}]
  %s5 = inlined_call_operand.vmem [shape: bf16[256,128], index: 5, kind: input, shape index: {}]
  %s6 = inlined_call_operand.vmem [shape: f32[1,128], index: 6, kind: input, shape index: {}]
  %s7 = inlined_call_operand.vmem [shape: f32[64,128], index: 7, kind: output, shape index: {}]
  %s8 = sld [smem:[#allocation0]]
  $region38: #{base_nn_forward.1} parent=0
    _
  %s10 = ssub.s32 1, %s8
  %s11 = scalar_select 0, %s10, %s8
  // Predicated region
  $region2: #{base_nn_forward.1} parent=0 // pred_check
    _
  $region3: #{base_nn_forward.1} parent=0 // pred_check_branch
    %13 = sbr.rel (0) target = $region5
  $region4: #{base_nn_forward.1} parent=0 // pred_region
    _
  $region5: #{base_nn_forward.1} parent=0 // pred_fallthru
    _
  // Predicated region
  $region6: #{base_nn_forward.1} parent=0 // pred_check
    _
  $region7: #{base_nn_forward.1} parent=0 // pred_check_branch
    %15 = sbr.rel (0) target = $region9
  $region8: #{base_nn_forward.1} parent=0 // pred_region
    _
  $region9: #{base_nn_forward.1} parent=0 // pred_fallthru
    _
  // Predicated region
  $region10: #{base_nn_forward.1} parent=0 // pred_check
    _
  $region11: #{base_nn_forward.1} parent=0 // pred_check_branch
    %17 = sbr.rel (0) target = $region13
  $region12: #{base_nn_forward.1} parent=0 // pred_region
    _
  $region13: #{base_nn_forward.1} parent=0 // pred_fallthru
    _
  // Predicated region
  $region14: #{base_nn_forward.1} parent=0 // pred_check
    _
  $region15: #{base_nn_forward.1} parent=0 // pred_check_branch
    %19 = sbr.rel (0) target = $region17
  $region16: #{base_nn_forward.1} parent=0 // pred_region
    _
  $region17: #{base_nn_forward.1} parent=0 // pred_fallthru
    _
  // Predicated region
  $region18: #{base_nn_forward.1} parent=0 // pred_check
    _
  $region19: #{base_nn_forward.1} parent=0 // pred_check_branch
    %21 = sbr.rel (0) target = $region21
  $region20: #{base_nn_forward.1} parent=0 // pred_region
    _
  $region21: #{base_nn_forward.1} parent=0 // pred_fallthru
    _
  // Predicated region
  $region22: #{base_nn_forward.1} parent=0 // pred_check
    _
  $region23: #{base_nn_forward.1} parent=0 // pred_check_branch
    %23 = sbr.rel (0) target = $region25
  $region24: #{base_nn_forward.1} parent=0 // pred_region
    _
  $region25: #{base_nn_forward.1} parent=0 // pred_fallthru
    _
  // Predicated region
  $region26: #{base_nn_forward.1} parent=0 // pred_check
    _
  $region27: #{base_nn_forward.1} parent=0 // pred_check_branch
    %25 = sbr.rel (0) target = $region29
  $region28: #{base_nn_forward.1} parent=0 // pred_region
    _
  $region29: #{base_nn_forward.1} parent=0 // pred_fallthru
    _
  %v27 = vld [vmem:[%s0] sm:$0xf]
  %v28 = vld [vmem:[%s0 + $0x4] sm:$0xf]
  %v29 = vld [vmem:[%s0 + $0x8] sm:$0xf]
  %v30 = vld [vmem:[%s0 + $0xc] sm:$0xf]
  %v31 = vld [vmem:[%s0 + $0x10] sm:$0xf]
  %v32 = vld [vmem:[%s0 + $0x14] sm:$0xf]
  %v33 = vld [vmem:[%s0 + $0x18] sm:$0xf]
  %v34 = vld [vmem:[%s0 + $0x1c] sm:$0xf]
  %v35 = vld [vmem:[%s1] sm:$0xff]
  %v36 = vld [vmem:[%s1 + $0x8] sm:$0xff]
  %v37 = vld [vmem:[%s1 + $0x10] sm:$0xff]
  %v38 = vld [vmem:[%s1 + $0x18] sm:$0xff]
  %v39 = vld [vmem:[%s1 + $0x20] sm:$0xff]
  %v40 = vld [vmem:[%s1 + $0x28] sm:$0xff]
  %v41 = vld [vmem:[%s1 + $0x30] sm:$0xff]
  %v42 = vld [vmem:[%s1 + $0x38] sm:$0xff]
  %v43 = vld [vmem:[%s1 + $0x40] sm:$0xff]
  %v44 = vld [vmem:[%s1 + $0x48] sm:$0xff]
  %v45 = vld [vmem:[%s1 + $0x50] sm:$0xff]
  %v46 = vld [vmem:[%s1 + $0x58] sm:$0xff]
  %v47 = vld [vmem:[%s1 + $0x60] sm:$0xff]
  %v48 = vld [vmem:[%s1 + $0x68] sm:$0xff]
  %v49 = vld [vmem:[%s1 + $0x70] sm:$0xff]
  %v50 = vld [vmem:[%s1 + $0x78] sm:$0xff]
  %v51 = vld [vmem:[%s1 + $0x80] sm:$0xff]
  %v52 = vld [vmem:[%s1 + $0x88] sm:$0xff]
  %v53 = vld [vmem:[%s1 + $0x90] sm:$0xff]
  %v54 = vld [vmem:[%s1 + $0x98] sm:$0xff]
  %v55 = vld [vmem:[%s1 + $0xa0] sm:$0xff]
  %v56 = vld [vmem:[%s1 + $0xa8] sm:$0xff]
  %v57 = vld [vmem:[%s1 + $0xb0] sm:$0xff]
  %v58 = vld [vmem:[%s1 + $0xb8] sm:$0xff]
  %v59 = vld [vmem:[%s1 + $0xc0] sm:$0xff]
  %v60 = vld [vmem:[%s1 + $0xc8] sm:$0xff]
  %v61 = vld [vmem:[%s1 + $0xd0] sm:$0xff]
  %v62 = vld [vmem:[%s1 + $0xd8] sm:$0xff]
  %v63 = vld [vmem:[%s1 + $0xe0] sm:$0xff]
  %v64 = vld [vmem:[%s1 + $0xe8] sm:$0xff]
  %v65 = vld [vmem:[%s1 + $0xf0] sm:$0xff]
  %v66 = vld [vmem:[%s1 + $0xf8] sm:$0xff]
  %v67 = vld [vmem:[%s1 + $0x100] sm:$0xff]
  %v68 = vld [vmem:[%s1 + $0x108] sm:$0xff]
  %v69 = vld [vmem:[%s1 + $0x110] sm:$0xff]
  %v70 = vld [vmem:[%s1 + $0x118] sm:$0xff]
  %v71 = vld [vmem:[%s1 + $0x120] sm:$0xff]
  %v72 = vld [vmem:[%s1 + $0x128] sm:$0xff]
  %v73 = vld [vmem:[%s1 + $0x130] sm:$0xff]
  %v74 = vld [vmem:[%s1 + $0x138] sm:$0xff]
  %v75 = vld [vmem:[%s1 + $0x140] sm:$0xff]
  %v76 = vld [vmem:[%s1 + $0x148] sm:$0xff]
  %v77 = vld [vmem:[%s1 + $0x150] sm:$0xff]
  %v78 = vld [vmem:[%s1 + $0x158] sm:$0xff]
  %v79 = vld [vmem:[%s1 + $0x160] sm:$0xff]
  %v80 = vld [vmem:[%s1 + $0x168] sm:$0xff]
  %v81 = vld [vmem:[%s1 + $0x170] sm:$0xff]
  %v82 = vld [vmem:[%s1 + $0x178] sm:$0xff]
  %v83 = vld [vmem:[%s1 + $0x180] sm:$0xff]
  %v84 = vld [vmem:[%s1 + $0x188] sm:$0xff]
  %v85 = vld [vmem:[%s1 + $0x190] sm:$0xff]
  %v86 = vld [vmem:[%s1 + $0x198] sm:$0xff]
  %v87 = vld [vmem:[%s1 + $0x1a0] sm:$0xff]
  %v88 = vld [vmem:[%s1 + $0x1a8] sm:$0xff]
  %v89 = vld [vmem:[%s1 + $0x1b0] sm:$0xff]
  %v90 = vld [vmem:[%s1 + $0x1b8] sm:$0xff]
  %v91 = vld [vmem:[%s1 + $0x1c0] sm:$0xff]
  %v92 = vld [vmem:[%s1 + $0x1c8] sm:$0xff]
  %v93 = vld [vmem:[%s1 + $0x1d0] sm:$0xff]
  %v94 = vld [vmem:[%s1 + $0x1d8] sm:$0xff]
  %v95 = vld [vmem:[%s1 + $0x1e0] sm:$0xff]
  %v96 = vld [vmem:[%s1 + $0x1e8] sm:$0xff]
  %v97 = vld [vmem:[%s1 + $0x1f0] sm:$0xff]
  %v98 = vld [vmem:[%s1 + $0x1f8] sm:$0xff]
  %v99 = vld [vmem:[%s2] sm:$0xff]
  %v101 = vlaneseq
  %v102 = vshrl.u32 %v101, 7
  %v103 = vsub.s32 0, %v102
  %v104 = vrot.slane %v99, %v103
  %v105 = vlaneseq
  %v106 = vshrl.u32 %v105, 7
  %v107 = vsub.s32 1, %v106
  %v108 = vrot.slane %v99, %v107
  %v109 = vlaneseq
  %v110 = vshrl.u32 %v109, 7
  %v111 = vsub.s32 2, %v110
  %v112 = vrot.slane %v99, %v111
  %v113 = vlaneseq
  %v114 = vshrl.u32 %v113, 7
  %v115 = vsub.s32 3, %v114
  %v116 = vrot.slane %v99, %v115
  %v117 = vlaneseq
  %v118 = vshrl.u32 %v117, 7
  %v119 = vsub.s32 4, %v118
  %v120 = vrot.slane %v99, %v119
  %v121 = vlaneseq
  %v122 = vshrl.u32 %v121, 7
  %v123 = vsub.s32 5, %v122
  %v124 = vrot.slane %v99, %v123
  %v125 = vlaneseq
  %v126 = vshrl.u32 %v125, 7
  %v127 = vsub.s32 6, %v126
  %v128 = vrot.slane %v99, %v127
  %v129 = vlaneseq
  %v130 = vshrl.u32 %v129, 7
  %v131 = vsub.s32 7, %v130
  %v132 = vrot.slane %v99, %v131
  %v149 = vunpack.c.l.b16 %v27
  %v150 = vunpack.c.l.b16 %v28
  %v151 = vunpack.c.l.b16 %v29
  %v152 = vunpack.c.l.b16 %v30
  %v153 = vunpack.c.l.b16 %v31
  %v154 = vunpack.c.l.b16 %v32
  %v155 = vunpack.c.l.b16 %v33
  %v156 = vunpack.c.l.b16 %v34
  %v157 = vpack.c.b16 %v150, %v149
  %v158 = vpack.c.b16 %v152, %v151
  %v159 = vpack.c.b16 %v154, %v153
  %v160 = vpack.c.b16 %v156, %v155
  %v229 = vunpack.c.l.b16 %v35
  %v230 = vunpack.c.h.b16 %v35
  %v231 = vunpack.c.l.b16 %v36
  %v232 = vunpack.c.h.b16 %v36
  %v233 = vunpack.c.l.b16 %v37
  %v234 = vunpack.c.h.b16 %v37
  %v235 = vunpack.c.l.b16 %v38
  %v236 = vunpack.c.h.b16 %v38
  %v237 = vunpack.c.l.b16 %v39
  %v238 = vunpack.c.h.b16 %v39
  %v239 = vunpack.c.l.b16 %v40
  %v240 = vunpack.c.h.b16 %v40
  %v241 = vunpack.c.l.b16 %v41
  %v242 = vunpack.c.h.b16 %v41
  %v243 = vunpack.c.l.b16 %v42
  %v244 = vunpack.c.h.b16 %v42
  %v245 = vunpack.c.l.b16 %v43
  %v246 = vunpack.c.h.b16 %v43
  %v247 = vunpack.c.l.b16 %v44
  %v248 = vunpack.c.h.b16 %v44
  %v249 = vunpack.c.l.b16 %v45
  %v250 = vunpack.c.h.b16 %v45
  %v251 = vunpack.c.l.b16 %v46
  %v252 = vunpack.c.h.b16 %v46
  %v253 = vunpack.c.l.b16 %v47
  %v254 = vunpack.c.h.b16 %v47
  %v255 = vunpack.c.l.b16 %v48
  %v256 = vunpack.c.h.b16 %v48
  %v257 = vunpack.c.l.b16 %v49
  %v258 = vunpack.c.h.b16 %v49
  %v259 = vunpack.c.l.b16 %v50
  %v260 = vunpack.c.h.b16 %v50
  %v261 = vunpack.c.l.b16 %v51
  %v262 = vunpack.c.h.b16 %v51
  %v263 = vunpack.c.l.b16 %v52
  %v264 = vunpack.c.h.b16 %v52
  %v265 = vunpack.c.l.b16 %v53
  %v266 = vunpack.c.h.b16 %v53
  %v267 = vunpack.c.l.b16 %v54
  %v268 = vunpack.c.h.b16 %v54
  %v269 = vunpack.c.l.b16 %v55
  %v270 = vunpack.c.h.b16 %v55
  %v271 = vunpack.c.l.b16 %v56
  %v272 = vunpack.c.h.b16 %v56
  %v273 = vunpack.c.l.b16 %v57
  %v274 = vunpack.c.h.b16 %v57
  %v275 = vunpack.c.l.b16 %v58
  %v276 = vunpack.c.h.b16 %v58
  %v277 = vunpack.c.l.b16 %v59
  %v278 = vunpack.c.h.b16 %v59
  %v279 = vunpack.c.l.b16 %v60
  %v280 = vunpack.c.h.b16 %v60
  %v281 = vunpack.c.l.b16 %v61
  %v282 = vunpack.c.h.b16 %v61
  %v283 = vunpack.c.l.b16 %v62
  %v284 = vunpack.c.h.b16 %v62
  %v285 = vunpack.c.l.b16 %v63
  %v286 = vunpack.c.h.b16 %v63
  %v287 = vunpack.c.l.b16 %v64
  %v288 = vunpack.c.h.b16 %v64
  %v289 = vunpack.c.l.b16 %v65
  %v290 = vunpack.c.h.b16 %v65
  %v291 = vunpack.c.l.b16 %v66
  %v292 = vunpack.c.h.b16 %v66
  %v293 = vunpack.c.l.b16 %v67
  %v294 = vunpack.c.h.b16 %v67
  %v295 = vunpack.c.l.b16 %v68
  %v296 = vunpack.c.h.b16 %v68
  %v297 = vunpack.c.l.b16 %v69
  %v298 = vunpack.c.h.b16 %v69
  %v299 = vunpack.c.l.b16 %v70
  %v300 = vunpack.c.h.b16 %v70
  %v301 = vunpack.c.l.b16 %v71
  %v302 = vunpack.c.h.b16 %v71
  %v303 = vunpack.c.l.b16 %v72
  %v304 = vunpack.c.h.b16 %v72
  %v305 = vunpack.c.l.b16 %v73
  %v306 = vunpack.c.h.b16 %v73
  %v307 = vunpack.c.l.b16 %v74
  %v308 = vunpack.c.h.b16 %v74
  %v309 = vunpack.c.l.b16 %v75
  %v310 = vunpack.c.h.b16 %v75
  %v311 = vunpack.c.l.b16 %v76
  %v312 = vunpack.c.h.b16 %v76
  %v313 = vunpack.c.l.b16 %v77
  %v314 = vunpack.c.h.b16 %v77
  %v315 = vunpack.c.l.b16 %v78
  %v316 = vunpack.c.h.b16 %v78
  %v317 = vunpack.c.l.b16 %v79
  %v318 = vunpack.c.h.b16 %v79
  %v319 = vunpack.c.l.b16 %v80
  %v320 = vunpack.c.h.b16 %v80
  %v321 = vunpack.c.l.b16 %v81
  %v322 = vunpack.c.h.b16 %v81
  %v323 = vunpack.c.l.b16 %v82
  %v324 = vunpack.c.h.b16 %v82
  %v325 = vunpack.c.l.b16 %v83
  %v326 = vunpack.c.h.b16 %v83
  %v327 = vunpack.c.l.b16 %v84
  %v328 = vunpack.c.h.b16 %v84
  %v329 = vunpack.c.l.b16 %v85
  %v330 = vunpack.c.h.b16 %v85
  %v331 = vunpack.c.l.b16 %v86
  %v332 = vunpack.c.h.b16 %v86
  %v333 = vunpack.c.l.b16 %v87
  %v334 = vunpack.c.h.b16 %v87
  %v335 = vunpack.c.l.b16 %v88
  %v336 = vunpack.c.h.b16 %v88
  %v337 = vunpack.c.l.b16 %v89
  %v338 = vunpack.c.h.b16 %v89
  %v339 = vunpack.c.l.b16 %v90
  %v340 = vunpack.c.h.b16 %v90
  %v341 = vunpack.c.l.b16 %v91
  %v342 = vunpack.c.h.b16 %v91
  %v343 = vunpack.c.l.b16 %v92
  %v344 = vunpack.c.h.b16 %v92
  %v345 = vunpack.c.l.b16 %v93
  %v346 = vunpack.c.h.b16 %v93
  %v347 = vunpack.c.l.b16 %v94
  %v348 = vunpack.c.h.b16 %v94
  %v349 = vunpack.c.l.b16 %v95
  %v350 = vunpack.c.h.b16 %v95
  %v351 = vunpack.c.l.b16 %v96
  %v352 = vunpack.c.h.b16 %v96
  %v353 = vunpack.c.l.b16 %v97
  %v354 = vunpack.c.h.b16 %v97
  %v355 = vunpack.c.l.b16 %v98
  %v356 = vunpack.c.h.b16 %v98
  %v357 = vpack.c.b16 %v237, %v229
  %v358 = vpack.c.b16 %v238, %v230
  %v359 = vpack.c.b16 %v239, %v231
  %v360 = vpack.c.b16 %v240, %v232
  %v361 = vpack.c.b16 %v241, %v233
  %v362 = vpack.c.b16 %v242, %v234
  %v363 = vpack.c.b16 %v243, %v235
  %v364 = vpack.c.b16 %v244, %v236
  %v365 = vpack.c.b16 %v253, %v245
  %v366 = vpack.c.b16 %v254, %v246
  %v367 = vpack.c.b16 %v255, %v247
  %v368 = vpack.c.b16 %v256, %v248
  %v369 = vpack.c.b16 %v257, %v249
  %v370 = vpack.c.b16 %v258, %v250
  %v371 = vpack.c.b16 %v259, %v251
  %v372 = vpack.c.b16 %v260, %v252
  %v373 = vpack.c.b16 %v269, %v261
  %v374 = vpack.c.b16 %v270, %v262
  %v375 = vpack.c.b16 %v271, %v263
  %v376 = vpack.c.b16 %v272, %v264
  %v377 = vpack.c.b16 %v273, %v265
  %v378 = vpack.c.b16 %v274, %v266
  %v379 = vpack.c.b16 %v275, %v267
  %v380 = vpack.c.b16 %v276, %v268
  %v381 = vpack.c.b16 %v285, %v277
  %v382 = vpack.c.b16 %v286, %v278
  %v383 = vpack.c.b16 %v287, %v279
  %v384 = vpack.c.b16 %v288, %v280
  %v385 = vpack.c.b16 %v289, %v281
  %v386 = vpack.c.b16 %v290, %v282
  %v387 = vpack.c.b16 %v291, %v283
  %v388 = vpack.c.b16 %v292, %v284
  %v389 = vpack.c.b16 %v301, %v293
  %v390 = vpack.c.b16 %v302, %v294
  %v391 = vpack.c.b16 %v303, %v295
  %v392 = vpack.c.b16 %v304, %v296
  %v393 = vpack.c.b16 %v305, %v297
  %v394 = vpack.c.b16 %v306, %v298
  %v395 = vpack.c.b16 %v307, %v299
  %v396 = vpack.c.b16 %v308, %v300
  %v397 = vpack.c.b16 %v317, %v309
  %v398 = vpack.c.b16 %v318, %v310
  %v399 = vpack.c.b16 %v319, %v311
  %v400 = vpack.c.b16 %v320, %v312
  %v401 = vpack.c.b16 %v321, %v313
  %v402 = vpack.c.b16 %v322, %v314
  %v403 = vpack.c.b16 %v323, %v315
  %v404 = vpack.c.b16 %v324, %v316
  %v405 = vpack.c.b16 %v333, %v325
  %v406 = vpack.c.b16 %v334, %v326
  %v407 = vpack.c.b16 %v335, %v327
  %v408 = vpack.c.b16 %v336, %v328
  %v409 = vpack.c.b16 %v337, %v329
  %v410 = vpack.c.b16 %v338, %v330
  %v411 = vpack.c.b16 %v339, %v331
  %v412 = vpack.c.b16 %v340, %v332
  %v413 = vpack.c.b16 %v349, %v341
  %v414 = vpack.c.b16 %v350, %v342
  %v415 = vpack.c.b16 %v351, %v343
  %v416 = vpack.c.b16 %v352, %v344
  %v417 = vpack.c.b16 %v353, %v345
  %v418 = vpack.c.b16 %v354, %v346
  %v419 = vpack.c.b16 %v355, %v347
  %v420 = vpack.c.b16 %v356, %v348
  %485 = vmatprep.subr.bf16.mxu0 %v358
  %486 = vmatpush1.bf16.msra.mxu0 %v357
  %487 = vmatprep.subr.bf16.mxu0 %v366
  %488 = vmatpush1.bf16.msra.mxu0 %v365
  %489 = vmatprep.subr.bf16.mxu0 %v374
  %490 = vmatpush1.bf16.msra.mxu0 %v373
  %491 = vmatprep.subr.bf16.mxu0 %v382
  %492 = vmatpush1.bf16.msra.mxu0 %v381
  %493 = vmatprep.subr.bf16.mxu0 %v390
  %494 = vmatpush1.bf16.msra.mxu0 %v389
  %495 = vmatprep.subr.bf16.mxu0 %v398
  %496 = vmatpush1.bf16.msra.mxu0 %v397
  %497 = vmatprep.subr.bf16.mxu0 %v406
  %498 = vmatpush1.bf16.msra.mxu0 %v405
  %499 = vmatprep.subr.bf16.mxu0 %v414
  %500 = vmatpush1.bf16.msra.mxu0 %v413
  %501 = vmatprep.subr.bf16.mxu0 0
  %502 = vmatpush1.bf16.msra.mxu0 0
  %503 = vmatprep.subr.bf16.mxu0 0
  %504 = vmatpush1.bf16.msra.mxu0 0
  %505 = vmatprep.subr.bf16.mxu0 0
  %506 = vmatpush1.bf16.msra.mxu0 0
  %507 = vmatprep.subr.bf16.mxu0 0
  %508 = vmatpush1.bf16.msra.mxu0 0
  %509 = vmatprep.subr.bf16.mxu0 0
  %510 = vmatpush1.bf16.msra.mxu0 0
  %511 = vmatprep.subr.bf16.mxu0 0
  %512 = vmatpush1.bf16.msra.mxu0 0
  %513 = vmatprep.subr.bf16.mxu0 0
  %514 = vmatpush1.bf16.msra.mxu0 0
  %515 = vmatprep.subr.bf16.mxu0 0
  %516 = vmatpush1.bf16.msra.mxu0 0
  %517 = vmatprep.mubr.bf16.mxu0 0
  %518 = vmatmul.mubr.bf16.gmra.mrb[0].mxu0 %v157
  %v519 = vpop.f32.mrb[0].mxu0
  %v520 = vadd.f32 %v104, %v519
  %v521 = vpop.f32.mrb[0].mxu0
  %v522 = vadd.f32 %v108, %v521
  %v523 = vpop.f32.mrb[0].mxu0
  %v524 = vadd.f32 %v104, %v523
  %v525 = vpop.f32.mrb[0].mxu0
  %v526 = vadd.f32 %v108, %v525
  %527 = vmatprep.mubr.bf16.mxu0 0
  %528 = vmatmul.mubr.bf16.gmra.mrb[0].mxu0 %v158
  %v529 = vpop.f32.mrb[0].mxu0
  %v530 = vadd.f32 %v104, %v529
  %v531 = vpop.f32.mrb[0].mxu0
  %v532 = vadd.f32 %v108, %v531
  %v533 = vpop.f32.mrb[0].mxu0
  %v534 = vadd.f32 %v104, %v533
  %v535 = vpop.f32.mrb[0].mxu0
  %v536 = vadd.f32 %v108, %v535
  %537 = vmatprep.mubr.bf16.mxu0 0
  %538 = vmatmul.mubr.bf16.gmra.mrb[0].mxu0 %v159
  %v539 = vpop.f32.mrb[0].mxu0
  %v540 = vadd.f32 %v104, %v539
  %v541 = vpop.f32.mrb[0].mxu0
  %v542 = vadd.f32 %v108, %v541
  %v543 = vpop.f32.mrb[0].mxu0
  %v544 = vadd.f32 %v104, %v543
  %v545 = vpop.f32.mrb[0].mxu0
  %v546 = vadd.f32 %v108, %v545
  %547 = vmatprep.mubr.bf16.mxu0 0
  %548 = vmatmul.mubr.bf16.gmra.mrb[0].mxu0 %v160
  %v549 = vpop.f32.mrb[0].mxu0
  %v550 = vadd.f32 %v104, %v549
  %v551 = vpop.f32.mrb[0].mxu0
  %v552 = vadd.f32 %v108, %v551
  %v553 = vpop.f32.mrb[0].mxu0
  %v554 = vadd.f32 %v104, %v553
  %v555 = vpop.f32.mrb[0].mxu0
  %v556 = vadd.f32 %v108, %v555
  %557 = vdwg.mxu0
  %558 = vmatprep.subr.bf16.mxu0 %v360
  %559 = vmatpush1.bf16.msra.mxu0 %v359
  %560 = vmatprep.subr.bf16.mxu0 %v368
  %561 = vmatpush1.bf16.msra.mxu0 %v367
  %562 = vmatprep.subr.bf16.mxu0 %v376
  %563 = vmatpush1.bf16.msra.mxu0 %v375
  %564 = vmatprep.subr.bf16.mxu0 %v384
  %565 = vmatpush1.bf16.msra.mxu0 %v383
  %566 = vmatprep.subr.bf16.mxu0 %v392
  %567 = vmatpush1.bf16.msra.mxu0 %v391
  %568 = vmatprep.subr.bf16.mxu0 %v400
  %569 = vmatpush1.bf16.msra.mxu0 %v399
  %570 = vmatprep.subr.bf16.mxu0 %v408
  %571 = vmatpush1.bf16.msra.mxu0 %v407
  %572 = vmatprep.subr.bf16.mxu0 %v416
  %573 = vmatpush1.bf16.msra.mxu0 %v415
  %574 = vmatprep.subr.bf16.mxu0 0
  %575 = vmatpush1.bf16.msra.mxu0 0
  %576 = vmatprep.subr.bf16.mxu0 0
  %577 = vmatpush1.bf16.msra.mxu0 0
  %578 = vmatprep.subr.bf16.mxu0 0
  %579 = vmatpush1.bf16.msra.mxu0 0
  %580 = vmatprep.subr.bf16.mxu0 0
  %581 = vmatpush1.bf16.msra.mxu0 0
  %582 = vmatprep.subr.bf16.mxu0 0
  %583 = vmatpush1.bf16.msra.mxu0 0
  %584 = vmatprep.subr.bf16.mxu0 0
  %585 = vmatpush1.bf16.msra.mxu0 0
  %586 = vmatprep.subr.bf16.mxu0 0
  %587 = vmatpush1.bf16.msra.mxu0 0
  %588 = vmatprep.subr.bf16.mxu0 0
  %589 = vmatpush1.bf16.msra.mxu0 0
  %590 = vmatprep.mubr.bf16.mxu0 0
  %591 = vmatmul.mubr.bf16.gmra.mrb[0].mxu0 %v157
  %v592 = vpop.f32.mrb[0].mxu0
  %v593 = vadd.f32 %v112, %v592
  %v594 = vpop.f32.mrb[0].mxu0
  %v595 = vadd.f32 %v116, %v594
  %v596 = vpop.f32.mrb[0].mxu0
  %v597 = vadd.f32 %v112, %v596
  %v598 = vpop.f32.mrb[0].mxu0
  %v599 = vadd.f32 %v116, %v598
  %600 = vmatprep.mubr.bf16.mxu0 0
  %601 = vmatmul.mubr.bf16.gmra.mrb[0].mxu0 %v158
  %v602 = vpop.f32.mrb[0].mxu0
  %v603 = vadd.f32 %v112, %v602
  %v604 = vpop.f32.mrb[0].mxu0
  %v605 = vadd.f32 %v116, %v604
  %v606 = vpop.f32.mrb[0].mxu0
  %v607 = vadd.f32 %v112, %v606
  %v608 = vpop.f32.mrb[0].mxu0
  %v609 = vadd.f32 %v116, %v608
  %610 = vmatprep.mubr.bf16.mxu0 0
  %611 = vmatmul.mubr.bf16.gmra.mrb[0].mxu0 %v159
  %v612 = vpop.f32.mrb[0].mxu0
  %v613 = vadd.f32 %v112, %v612
  %v614 = vpop.f32.mrb[0].mxu0
  %v615 = vadd.f32 %v116, %v614
  %v616 = vpop.f32.mrb[0].mxu0
  %v617 = vadd.f32 %v112, %v616
  %v618 = vpop.f32.mrb[0].mxu0
  %v619 = vadd.f32 %v116, %v618
  %620 = vmatprep.mubr.bf16.mxu0 0
  %621 = vmatmul.mubr.bf16.gmra.mrb[0].mxu0 %v160
  %v622 = vpop.f32.mrb[0].mxu0
  %v623 = vadd.f32 %v112, %v622
  %v624 = vpop.f32.mrb[0].mxu0
  %v625 = vadd.f32 %v116, %v624
  %v626 = vpop.f32.mrb[0].mxu0
  %v627 = vadd.f32 %v112, %v626
  %v628 = vpop.f32.mrb[0].mxu0
  %v629 = vadd.f32 %v116, %v628
  %630 = vdwg.mxu0
  %631 = vmatprep.subr.bf16.mxu0 %v362
  %632 = vmatpush1.bf16.msra.mxu0 %v361
  %633 = vmatprep.subr.bf16.mxu0 %v370
  %634 = vmatpush1.bf16.msra.mxu0 %v369
  %635 = vmatprep.subr.bf16.mxu0 %v378
  %636 = vmatpush1.bf16.msra.mxu0 %v377
  %637 = vmatprep.subr.bf16.mxu0 %v386
  %638 = vmatpush1.bf16.msra.mxu0 %v385
  %639 = vmatprep.subr.bf16.mxu0 %v394
  %640 = vmatpush1.bf16.msra.mxu0 %v393
  %641 = vmatprep.subr.bf16.mxu0 %v402
  %642 = vmatpush1.bf16.msra.mxu0 %v401
  %643 = vmatprep.subr.bf16.mxu0 %v410
  %644 = vmatpush1.bf16.msra.mxu0 %v409
  %645 = vmatprep.subr.bf16.mxu0 %v418
  %646 = vmatpush1.bf16.msra.mxu0 %v417
  %647 = vmatprep.subr.bf16.mxu0 0
  %648 = vmatpush1.bf16.msra.mxu0 0
  %649 = vmatprep.subr.bf16.mxu0 0
  %650 = vmatpush1.bf16.msra.mxu0 0
  %651 = vmatprep.subr.bf16.mxu0 0
  %652 = vmatpush1.bf16.msra.mxu0 0
  %653 = vmatprep.subr.bf16.mxu0 0
  %654 = vmatpush1.bf16.msra.mxu0 0
  %655 = vmatprep.subr.bf16.mxu0 0
  %656 = vmatpush1.bf16.msra.mxu0 0
  %657 = vmatprep.subr.bf16.mxu0 0
  %658 = vmatpush1.bf16.msra.mxu0 0
  %659 = vmatprep.subr.bf16.mxu0 0
  %660 = vmatpush1.bf16.msra.mxu0 0
  %661 = vmatprep.subr.bf16.mxu0 0
  %662 = vmatpush1.bf16.msra.mxu0 0
  %663 = vmatprep.mubr.bf16.mxu0 0
  %664 = vmatmul.mubr.bf16.gmra.mrb[0].mxu0 %v157
  %v665 = vpop.f32.mrb[0].mxu0
  %v666 = vadd.f32 %v120, %v665
  %v667 = vpop.f32.mrb[0].mxu0
  %v668 = vadd.f32 %v124, %v667
  %v669 = vpop.f32.mrb[0].mxu0
  %v670 = vadd.f32 %v120, %v669
  %v671 = vpop.f32.mrb[0].mxu0
  %v672 = vadd.f32 %v124, %v671
  %673 = vmatprep.mubr.bf16.mxu0 0
  %674 = vmatmul.mubr.bf16.gmra.mrb[0].mxu0 %v158
  %v675 = vpop.f32.mrb[0].mxu0
  %v676 = vadd.f32 %v120, %v675
  %v677 = vpop.f32.mrb[0].mxu0
  %v678 = vadd.f32 %v124, %v677
  %v679 = vpop.f32.mrb[0].mxu0
  %v680 = vadd.f32 %v120, %v679
  %v681 = vpop.f32.mrb[0].mxu0
  %v682 = vadd.f32 %v124, %v681
  %683 = vmatprep.mubr.bf16.mxu0 0
  %684 = vmatmul.mubr.bf16.gmra.mrb[0].mxu0 %v159
  %v685 = vpop.f32.mrb[0].mxu0
  %v686 = vadd.f32 %v120, %v685
  %v687 = vpop.f32.mrb[0].mxu0
  %v688 = vadd.f32 %v124, %v687
  %v689 = vpop.f32.mrb[0].mxu0
  %v690 = vadd.f32 %v120, %v689
  %v691 = vpop.f32.mrb[0].mxu0
  %v692 = vadd.f32 %v124, %v691
  %693 = vmatprep.mubr.bf16.mxu0 0
  %694 = vmatmul.mubr.bf16.gmra.mrb[0].mxu0 %v160
  %v695 = vpop.f32.mrb[0].mxu0
  %v696 = vadd.f32 %v120, %v695
  %v697 = vpop.f32.mrb[0].mxu0
  %v698 = vadd.f32 %v124, %v697
  %v699 = vpop.f32.mrb[0].mxu0
  %v700 = vadd.f32 %v120, %v699
  %v701 = vpop.f32.mrb[0].mxu0
  %v702 = vadd.f32 %v124, %v701
  %703 = vdwg.mxu0
  %704 = vmatprep.subr.bf16.mxu0 %v364
  %705 = vmatpush1.bf16.msra.mxu0 %v363
  %706 = vmatprep.subr.bf16.mxu0 %v372
  %707 = vmatpush1.bf16.msra.mxu0 %v371
  %708 = vmatprep.subr.bf16.mxu0 %v380
  %709 = vmatpush1.bf16.msra.mxu0 %v379
  %710 = vmatprep.subr.bf16.mxu0 %v388
  %711 = vmatpush1.bf16.msra.mxu0 %v387
  %712 = vmatprep.subr.bf16.mxu0 %v396
  %713 = vmatpush1.bf16.msra.mxu0 %v395
  %714 = vmatprep.subr.bf16.mxu0 %v404
  %715 = vmatpush1.bf16.msra.mxu0 %v403
  %716 = vmatprep.subr.bf16.mxu0 %v412
  %717 = vmatpush1.bf16.msra.mxu0 %v411
  %718 = vmatprep.subr.bf16.mxu0 %v420
  %719 = vmatpush1.bf16.msra.mxu0 %v419
  %720 = vmatprep.subr.bf16.mxu0 0
  %721 = vmatpush1.bf16.msra.mxu0 0
  %722 = vmatprep.subr.bf16.mxu0 0
  %723 = vmatpush1.bf16.msra.mxu0 0
  %724 = vmatprep.subr.bf16.mxu0 0
  %725 = vmatpush1.bf16.msra.mxu0 0
  %726 = vmatprep.subr.bf16.mxu0 0
  %727 = vmatpush1.bf16.msra.mxu0 0
  %728 = vmatprep.subr.bf16.mxu0 0
  %729 = vmatpush1.bf16.msra.mxu0 0
  %730 = vmatprep.subr.bf16.mxu0 0
  %731 = vmatpush1.bf16.msra.mxu0 0
  %732 = vmatprep.subr.bf16.mxu0 0
  %733 = vmatpush1.bf16.msra.mxu0 0
  %734 = vmatprep.subr.bf16.mxu0 0
  %735 = vmatpush1.bf16.msra.mxu0 0
  %736 = vmatprep.mubr.bf16.mxu0 0
  %737 = vmatmul.mubr.bf16.gmra.mrb[0].mxu0 %v157
  %v738 = vpop.f32.mrb[0].mxu0
  %v739 = vadd.f32 %v128, %v738
  %v740 = vpop.f32.mrb[0].mxu0
  %v741 = vadd.f32 %v132, %v740
  %v742 = vpop.f32.mrb[0].mxu0
  %v743 = vadd.f32 %v128, %v742
  %v744 = vpop.f32.mrb[0].mxu0
  %v745 = vadd.f32 %v132, %v744
  %746 = vmatprep.mubr.bf16.mxu0 0
  %747 = vmatmul.mubr.bf16.gmra.mrb[0].mxu0 %v158
  %v748 = vpop.f32.mrb[0].mxu0
  %v749 = vadd.f32 %v128, %v748
  %v750 = vpop.f32.mrb[0].mxu0
  %v751 = vadd.f32 %v132, %v750
  %v752 = vpop.f32.mrb[0].mxu0
  %v753 = vadd.f32 %v128, %v752
  %v754 = vpop.f32.mrb[0].mxu0
  %v755 = vadd.f32 %v132, %v754
  %756 = vmatprep.mubr.bf16.mxu0 0
  %757 = vmatmul.mubr.bf16.gmra.mrb[0].mxu0 %v159
  %v758 = vpop.f32.mrb[0].mxu0
  %v759 = vadd.f32 %v128, %v758
  %v760 = vpop.f32.mrb[0].mxu0
  %v761 = vadd.f32 %v132, %v760
  %v762 = vpop.f32.mrb[0].mxu0
  %v763 = vadd.f32 %v128, %v762
  %v764 = vpop.f32.mrb[0].mxu0
  %v765 = vadd.f32 %v132, %v764
  %766 = vmatprep.mubr.bf16.mxu0 0
  %767 = vmatmul.mubr.bf16.gmra.mrb[0].mxu0 %v160
  %v768 = vpop.f32.mrb[0].mxu0
  %v769 = vadd.f32 %v128, %v768
  %v770 = vpop.f32.mrb[0].mxu0
  %v771 = vadd.f32 %v132, %v770
  %v772 = vpop.f32.mrb[0].mxu0
  %v773 = vadd.f32 %v128, %v772
  %v774 = vpop.f32.mrb[0].mxu0
  %v775 = vadd.f32 %v132, %v774
  %776 = vdwg.mxu0
  %v777 = vmax.f32 %v520, 0.0
  %v778 = vmax.f32 %v522, 0.0
  %v779 = vmax.f32 %v593, 0.0
  %v780 = vmax.f32 %v595, 0.0
  %v781 = vmax.f32 %v666, 0.0
  %v782 = vmax.f32 %v668, 0.0
  %v783 = vmax.f32 %v739, 0.0
  %v784 = vmax.f32 %v741, 0.0
  %v785 = vmax.f32 %v524, 0.0
  %v786 = vmax.f32 %v526, 0.0
  %v787 = vmax.f32 %v597, 0.0
  %v788 = vmax.f32 %v599, 0.0
  %v789 = vmax.f32 %v670, 0.0
  %v790 = vmax.f32 %v672, 0.0
  %v791 = vmax.f32 %v743, 0.0
  %v792 = vmax.f32 %v745, 0.0
  %v793 = vmax.f32 %v530, 0.0
  %v794 = vmax.f32 %v532, 0.0
  %v795 = vmax.f32 %v603, 0.0
  %v796 = vmax.f32 %v605, 0.0
  %v797 = vmax.f32 %v676, 0.0
  %v798 = vmax.f32 %v678, 0.0
  %v799 = vmax.f32 %v749, 0.0
  %v800 = vmax.f32 %v751, 0.0
  %v801 = vmax.f32 %v534, 0.0
  %v802 = vmax.f32 %v536, 0.0
  %v803 = vmax.f32 %v607, 0.0
  %v804 = vmax.f32 %v609, 0.0
  %v805 = vmax.f32 %v680, 0.0
  %v806 = vmax.f32 %v682, 0.0
  %v807 = vmax.f32 %v753, 0.0
  %v808 = vmax.f32 %v755, 0.0
  %v809 = vmax.f32 %v540, 0.0
  %v810 = vmax.f32 %v542, 0.0
  %v811 = vmax.f32 %v613, 0.0
  %v812 = vmax.f32 %v615, 0.0
  %v813 = vmax.f32 %v686, 0.0
  %v814 = vmax.f32 %v688, 0.0
  %v815 = vmax.f32 %v759, 0.0
  %v816 = vmax.f32 %v761, 0.0
  %v817 = vmax.f32 %v544, 0.0
  %v818 = vmax.f32 %v546, 0.0
  %v819 = vmax.f32 %v617, 0.0
  %v820 = vmax.f32 %v619, 0.0
  %v821 = vmax.f32 %v690, 0.0
  %v822 = vmax.f32 %v692, 0.0
  %v823 = vmax.f32 %v763, 0.0
  %v824 = vmax.f32 %v765, 0.0
  %v825 = vmax.f32 %v550, 0.0
  %v826 = vmax.f32 %v552, 0.0
  %v827 = vmax.f32 %v623, 0.0
  %v828 = vmax.f32 %v625, 0.0
  %v829 = vmax.f32 %v696, 0.0
  %v830 = vmax.f32 %v698, 0.0
  %v831 = vmax.f32 %v769, 0.0
  %v832 = vmax.f32 %v771, 0.0
  %v833 = vmax.f32 %v554, 0.0
  %v834 = vmax.f32 %v556, 0.0
  %v835 = vmax.f32 %v627, 0.0
  %v836 = vmax.f32 %v629, 0.0
  %v837 = vmax.f32 %v700, 0.0
  %v838 = vmax.f32 %v702, 0.0
  %v839 = vmax.f32 %v773, 0.0
  %v840 = vmax.f32 %v775, 0.0
  %v841 = vpack.c.bf16 %v785, %v777
  %v842 = vpack.c.bf16 %v786, %v778
  %v843 = vpack.c.bf16 %v787, %v779
  %v844 = vpack.c.bf16 %v788, %v780
  %v845 = vpack.c.bf16 %v789, %v781
  %v846 = vpack.c.bf16 %v790, %v782
  %v847 = vpack.c.bf16 %v791, %v783
  %v848 = vpack.c.bf16 %v792, %v784
  %v849 = vpack.c.bf16 %v801, %v793
  %v850 = vpack.c.bf16 %v802, %v794
  %v851 = vpack.c.bf16 %v803, %v795
  %v852 = vpack.c.bf16 %v804, %v796
  %v853 = vpack.c.bf16 %v805, %v797
  %v854 = vpack.c.bf16 %v806, %v798
  %v855 = vpack.c.bf16 %v807, %v799
  %v856 = vpack.c.bf16 %v808, %v800
  %v857 = vpack.c.bf16 %v817, %v809
  %v858 = vpack.c.bf16 %v818, %v810
  %v859 = vpack.c.bf16 %v819, %v811
  %v860 = vpack.c.bf16 %v820, %v812
  %v861 = vpack.c.bf16 %v821, %v813
  %v862 = vpack.c.bf16 %v822, %v814
  %v863 = vpack.c.bf16 %v823, %v815
  %v864 = vpack.c.bf16 %v824, %v816
  %v865 = vpack.c.bf16 %v833, %v825
  %v866 = vpack.c.bf16 %v834, %v826
  %v867 = vpack.c.bf16 %v835, %v827
  %v868 = vpack.c.bf16 %v836, %v828
  %v869 = vpack.c.bf16 %v837, %v829
  %v870 = vpack.c.bf16 %v838, %v830
  %v871 = vpack.c.bf16 %v839, %v831
  %v872 = vpack.c.bf16 %v840, %v832
  %v873 = vld [vmem:[%s3] sm:$0xff]
  %v874 = vld [vmem:[%s3 + $0x8] sm:$0xff]
  %v875 = vld [vmem:[%s3 + $0x10] sm:$0xff]
  %v876 = vld [vmem:[%s3 + $0x18] sm:$0xff]
  %v877 = vld [vmem:[%s3 + $0x20] sm:$0xff]
  %v878 = vld [vmem:[%s3 + $0x28] sm:$0xff]
  %v879 = vld [vmem:[%s3 + $0x30] sm:$0xff]
  %v880 = vld [vmem:[%s3 + $0x38] sm:$0xff]
  %v881 = vld [vmem:[%s3 + $0x40] sm:$0xff]
  %v882 = vld [vmem:[%s3 + $0x48] sm:$0xff]
  %v883 = vld [vmem:[%s3 + $0x50] sm:$0xff]
  %v884 = vld [vmem:[%s3 + $0x58] sm:$0xff]
  %v885 = vld [vmem:[%s3 + $0x60] sm:$0xff]
  %v886 = vld [vmem:[%s3 + $0x68] sm:$0xff]
  %v887 = vld [vmem:[%s3 + $0x70] sm:$0xff]
  %v888 = vld [vmem:[%s3 + $0x78] sm:$0xff]
  %v889 = vld [vmem:[%s3 + $0x80] sm:$0xff]
  %v890 = vld [vmem:[%s3 + $0x88] sm:$0xff]
  %v891 = vld [vmem:[%s3 + $0x90] sm:$0xff]
  %v892 = vld [vmem:[%s3 + $0x98] sm:$0xff]
  %v893 = vld [vmem:[%s3 + $0xa0] sm:$0xff]
  %v894 = vld [vmem:[%s3 + $0xa8] sm:$0xff]
  %v895 = vld [vmem:[%s3 + $0xb0] sm:$0xff]
  %v896 = vld [vmem:[%s3 + $0xb8] sm:$0xff]
  %v897 = vld [vmem:[%s3 + $0xc0] sm:$0xff]
  %v898 = vld [vmem:[%s3 + $0xc8] sm:$0xff]
  %v899 = vld [vmem:[%s3 + $0xd0] sm:$0xff]
  %v900 = vld [vmem:[%s3 + $0xd8] sm:$0xff]
  %v901 = vld [vmem:[%s3 + $0xe0] sm:$0xff]
  %v902 = vld [vmem:[%s3 + $0xe8] sm:$0xff]
  %v903 = vld [vmem:[%s3 + $0xf0] sm:$0xff]
  %v904 = vld [vmem:[%s3 + $0xf8] sm:$0xff]
  %v905 = vld [vmem:[%s3 + $0x100] sm:$0xff]
  %v906 = vld [vmem:[%s3 + $0x108] sm:$0xff]
  %v907 = vld [vmem:[%s3 + $0x110] sm:$0xff]
  %v908 = vld [vmem:[%s3 + $0x118] sm:$0xff]
  %v909 = vld [vmem:[%s3 + $0x120] sm:$0xff]
  %v910 = vld [vmem:[%s3 + $0x128] sm:$0xff]
  %v911 = vld [vmem:[%s3 + $0x130] sm:$0xff]
  %v912 = vld [vmem:[%s3 + $0x138] sm:$0xff]
  %v913 = vld [vmem:[%s3 + $0x140] sm:$0xff]
  %v914 = vld [vmem:[%s3 + $0x148] sm:$0xff]
  %v915 = vld [vmem:[%s3 + $0x150] sm:$0xff]
  %v916 = vld [vmem:[%s3 + $0x158] sm:$0xff]
  %v917 = vld [vmem:[%s3 + $0x160] sm:$0xff]
  %v918 = vld [vmem:[%s3 + $0x168] sm:$0xff]
  %v919 = vld [vmem:[%s3 + $0x170] sm:$0xff]
  %v920 = vld [vmem:[%s3 + $0x178] sm:$0xff]
  %v921 = vld [vmem:[%s3 + $0x180] sm:$0xff]
  %v922 = vld [vmem:[%s3 + $0x188] sm:$0xff]
  %v923 = vld [vmem:[%s3 + $0x190] sm:$0xff]
  %v924 = vld [vmem:[%s3 + $0x198] sm:$0xff]
  %v925 = vld [vmem:[%s3 + $0x1a0] sm:$0xff]
  %v926 = vld [vmem:[%s3 + $0x1a8] sm:$0xff]
  %v927 = vld [vmem:[%s3 + $0x1b0] sm:$0xff]
  %v928 = vld [vmem:[%s3 + $0x1b8] sm:$0xff]
  %v929 = vld [vmem:[%s3 + $0x1c0] sm:$0xff]
  %v930 = vld [vmem:[%s3 + $0x1c8] sm:$0xff]
  %v931 = vld [vmem:[%s3 + $0x1d0] sm:$0xff]
  %v932 = vld [vmem:[%s3 + $0x1d8] sm:$0xff]
  %v933 = vld [vmem:[%s3 + $0x1e0] sm:$0xff]
  %v934 = vld [vmem:[%s3 + $0x1e8] sm:$0xff]
  %v935 = vld [vmem:[%s3 + $0x1f0] sm:$0xff]
  %v936 = vld [vmem:[%s3 + $0x1f8] sm:$0xff]
  %v937 = vld [vmem:[%s3 + $0x200] sm:$0xff]
  %v938 = vld [vmem:[%s3 + $0x208] sm:$0xff]
  %v939 = vld [vmem:[%s3 + $0x210] sm:$0xff]
  %v940 = vld [vmem:[%s3 + $0x218] sm:$0xff]
  %v941 = vld [vmem:[%s3 + $0x220] sm:$0xff]
  %v942 = vld [vmem:[%s3 + $0x228] sm:$0xff]
  %v943 = vld [vmem:[%s3 + $0x230] sm:$0xff]
  %v944 = vld [vmem:[%s3 + $0x238] sm:$0xff]
  %v945 = vld [vmem:[%s3 + $0x240] sm:$0xff]
  %v946 = vld [vmem:[%s3 + $0x248] sm:$0xff]
  %v947 = vld [vmem:[%s3 + $0x250] sm:$0xff]
  %v948 = vld [vmem:[%s3 + $0x258] sm:$0xff]
  %v949 = vld [vmem:[%s3 + $0x260] sm:$0xff]
  %v950 = vld [vmem:[%s3 + $0x268] sm:$0xff]
  %v951 = vld [vmem:[%s3 + $0x270] sm:$0xff]
  %v952 = vld [vmem:[%s3 + $0x278] sm:$0xff]
  %v953 = vld [vmem:[%s3 + $0x280] sm:$0xff]
  %v954 = vld [vmem:[%s3 + $0x288] sm:$0xff]
  %v955 = vld [vmem:[%s3 + $0x290] sm:$0xff]
  %v956 = vld [vmem:[%s3 + $0x298] sm:$0xff]
  %v957 = vld [vmem:[%s3 + $0x2a0] sm:$0xff]
  %v958 = vld [vmem:[%s3 + $0x2a8] sm:$0xff]
  %v959 = vld [vmem:[%s3 + $0x2b0] sm:$0xff]
  %v960 = vld [vmem:[%s3 + $0x2b8] sm:$0xff]
  %v961 = vld [vmem:[%s3 + $0x2c0] sm:$0xff]
  %v962 = vld [vmem:[%s3 + $0x2c8] sm:$0xff]
  %v963 = vld [vmem:[%s3 + $0x2d0] sm:$0xff]
  %v964 = vld [vmem:[%s3 + $0x2d8] sm:$0xff]
  %v965 = vld [vmem:[%s3 + $0x2e0] sm:$0xff]
  %v966 = vld [vmem:[%s3 + $0x2e8] sm:$0xff]
  %v967 = vld [vmem:[%s3 + $0x2f0] sm:$0xff]
  %v968 = vld [vmem:[%s3 + $0x2f8] sm:$0xff]
  %v969 = vld [vmem:[%s3 + $0x300] sm:$0xff]
  %v970 = vld [vmem:[%s3 + $0x308] sm:$0xff]
  %v971 = vld [vmem:[%s3 + $0x310] sm:$0xff]
  %v972 = vld [vmem:[%s3 + $0x318] sm:$0xff]
  %v973 = vld [vmem:[%s3 + $0x320] sm:$0xff]
  %v974 = vld [vmem:[%s3 + $0x328] sm:$0xff]
  %v975 = vld [vmem:[%s3 + $0x330] sm:$0xff]
  %v976 = vld [vmem:[%s3 + $0x338] sm:$0xff]
  %v977 = vld [vmem:[%s3 + $0x340] sm:$0xff]
  %v978 = vld [vmem:[%s3 + $0x348] sm:$0xff]
  %v979 = vld [vmem:[%s3 + $0x350] sm:$0xff]
  %v980 = vld [vmem:[%s3 + $0x358] sm:$0xff]
  %v981 = vld [vmem:[%s3 + $0x360] sm:$0xff]
  %v982 = vld [vmem:[%s3 + $0x368] sm:$0xff]
  %v983 = vld [vmem:[%s3 + $0x370] sm:$0xff]
  %v984 = vld [vmem:[%s3 + $0x378] sm:$0xff]
  %v985 = vld [vmem:[%s3 + $0x380] sm:$0xff]
  %v986 = vld [vmem:[%s3 + $0x388] sm:$0xff]
  %v987 = vld [vmem:[%s3 + $0x390] sm:$0xff]
  %v988 = vld [vmem:[%s3 + $0x398] sm:$0xff]
  %v989 = vld [vmem:[%s3 + $0x3a0] sm:$0xff]
  %v990 = vld [vmem:[%s3 + $0x3a8] sm:$0xff]
  %v991 = vld [vmem:[%s3 + $0x3b0] sm:$0xff]
  %v992 = vld [vmem:[%s3 + $0x3b8] sm:$0xff]
  %v993 = vld [vmem:[%s3 + $0x3c0] sm:$0xff]
  %v994 = vld [vmem:[%s3 + $0x3c8] sm:$0xff]
  %v995 = vld [vmem:[%s3 + $0x3d0] sm:$0xff]
  %v996 = vld [vmem:[%s3 + $0x3d8] sm:$0xff]
  %v997 = vld [vmem:[%s3 + $0x3e0] sm:$0xff]
  %v998 = vld [vmem:[%s3 + $0x3e8] sm:$0xff]
  %v999 = vld [vmem:[%s3 + $0x3f0] sm:$0xff]
  %v1000 = vld [vmem:[%s3 + $0x3f8] sm:$0xff]
  %v1001 = vld [vmem:[%s4] sm:$0x3]
  %v1003 = vlaneseq
  %v1004 = vshrl.u32 %v1003, 7
  %v1005 = vsub.s32 0, %v1004
  %v1006 = vrot.slane %v1001, %v1005
  %v1007 = vlaneseq
  %v1008 = vshrl.u32 %v1007, 7
  %v1009 = vsub.s32 1, %v1008
  %v1010 = vrot.slane %v1001, %v1009
  %v1141 = vunpack.c.l.b16 %v873
  %v1142 = vunpack.c.h.b16 %v873
  %v1143 = vunpack.c.l.b16 %v874
  %v1144 = vunpack.c.h.b16 %v874
  %v1145 = vunpack.c.l.b16 %v875
  %v1146 = vunpack.c.h.b16 %v875
  %v1147 = vunpack.c.l.b16 %v876
  %v1148 = vunpack.c.h.b16 %v876
  %v1149 = vunpack.c.l.b16 %v877
  %v1150 = vunpack.c.h.b16 %v877
  %v1151 = vunpack.c.l.b16 %v878
  %v1152 = vunpack.c.h.b16 %v878
  %v1153 = vunpack.c.l.b16 %v879
  %v1154 = vunpack.c.h.b16 %v879
  %v1155 = vunpack.c.l.b16 %v880
  %v1156 = vunpack.c.h.b16 %v880
  %v1157 = vunpack.c.l.b16 %v881
  %v1158 = vunpack.c.h.b16 %v881
  %v1159 = vunpack.c.l.b16 %v882
  %v1160 = vunpack.c.h.b16 %v882
  %v1161 = vunpack.c.l.b16 %v883
  %v1162 = vunpack.c.h.b16 %v883
  %v1163 = vunpack.c.l.b16 %v884
  %v1164 = vunpack.c.h.b16 %v884
  %v1165 = vunpack.c.l.b16 %v885
  %v1166 = vunpack.c.h.b16 %v885
  %v1167 = vunpack.c.l.b16 %v886
  %v1168 = vunpack.c.h.b16 %v886
  %v1169 = vunpack.c.l.b16 %v887
  %v1170 = vunpack.c.h.b16 %v887
  %v1171 = vunpack.c.l.b16 %v888
  %v1172 = vunpack.c.h.b16 %v888
  %v1173 = vunpack.c.l.b16 %v889
  %v1174 = vunpack.c.h.b16 %v889
  %v1175 = vunpack.c.l.b16 %v890
  %v1176 = vunpack.c.h.b16 %v890
  %v1177 = vunpack.c.l.b16 %v891
  %v1178 = vunpack.c.h.b16 %v891
  %v1179 = vunpack.c.l.b16 %v892
  %v1180 = vunpack.c.h.b16 %v892
  %v1181 = vunpack.c.l.b16 %v893
  %v1182 = vunpack.c.h.b16 %v893
  %v1183 = vunpack.c.l.b16 %v894
  %v1184 = vunpack.c.h.b16 %v894
  %v1185 = vunpack.c.l.b16 %v895
  %v1186 = vunpack.c.h.b16 %v895
  %v1187 = vunpack.c.l.b16 %v896
  %v1188 = vunpack.c.h.b16 %v896
  %v1189 = vunpack.c.l.b16 %v897
  %v1190 = vunpack.c.h.b16 %v897
  %v1191 = vunpack.c.l.b16 %v898
  %v1192 = vunpack.c.h.b16 %v898
  %v1193 = vunpack.c.l.b16 %v899
  %v1194 = vunpack.c.h.b16 %v899
  %v1195 = vunpack.c.l.b16 %v900
  %v1196 = vunpack.c.h.b16 %v900
  %v1197 = vunpack.c.l.b16 %v901
  %v1198 = vunpack.c.h.b16 %v901
  %v1199 = vunpack.c.l.b16 %v902
  %v1200 = vunpack.c.h.b16 %v902
  %v1201 = vunpack.c.l.b16 %v903
  %v1202 = vunpack.c.h.b16 %v903
  %v1203 = vunpack.c.l.b16 %v904
  %v1204 = vunpack.c.h.b16 %v904
  %v1205 = vunpack.c.l.b16 %v905
  %v1206 = vunpack.c.h.b16 %v905
  %v1207 = vunpack.c.l.b16 %v906
  %v1208 = vunpack.c.h.b16 %v906
  %v1209 = vunpack.c.l.b16 %v907
  %v1210 = vunpack.c.h.b16 %v907
  %v1211 = vunpack.c.l.b16 %v908
  %v1212 = vunpack.c.h.b16 %v908
  %v1213 = vunpack.c.l.b16 %v909
  %v1214 = vunpack.c.h.b16 %v909
  %v1215 = vunpack.c.l.b16 %v910
  %v1216 = vunpack.c.h.b16 %v910
  %v1217 = vunpack.c.l.b16 %v911
  %v1218 = vunpack.c.h.b16 %v911
  %v1219 = vunpack.c.l.b16 %v912
  %v1220 = vunpack.c.h.b16 %v912
  %v1221 = vunpack.c.l.b16 %v913
  %v1222 = vunpack.c.h.b16 %v913
  %v1223 = vunpack.c.l.b16 %v914
  %v1224 = vunpack.c.h.b16 %v914
  %v1225 = vunpack.c.l.b16 %v915
  %v1226 = vunpack.c.h.b16 %v915
  %v1227 = vunpack.c.l.b16 %v916
  %v1228 = vunpack.c.h.b16 %v916
  %v1229 = vunpack.c.l.b16 %v917
  %v1230 = vunpack.c.h.b16 %v917
  %v1231 = vunpack.c.l.b16 %v918
  %v1232 = vunpack.c.h.b16 %v918
  %v1233 = vunpack.c.l.b16 %v919
  %v1234 = vunpack.c.h.b16 %v919
  %v1235 = vunpack.c.l.b16 %v920
  %v1236 = vunpack.c.h.b16 %v920
  %v1237 = vunpack.c.l.b16 %v921
  %v1238 = vunpack.c.h.b16 %v921
  %v1239 = vunpack.c.l.b16 %v922
  %v1240 = vunpack.c.h.b16 %v922
  %v1241 = vunpack.c.l.b16 %v923
  %v1242 = vunpack.c.h.b16 %v923
  %v1243 = vunpack.c.l.b16 %v924
  %v1244 = vunpack.c.h.b16 %v924
  %v1245 = vunpack.c.l.b16 %v925
  %v1246 = vunpack.c.h.b16 %v925
  %v1247 = vunpack.c.l.b16 %v926
  %v1248 = vunpack.c.h.b16 %v926
  %v1249 = vunpack.c.l.b16 %v927
  %v1250 = vunpack.c.h.b16 %v927
  %v1251 = vunpack.c.l.b16 %v928
  %v1252 = vunpack.c.h.b16 %v928
  %v1253 = vunpack.c.l.b16 %v929
  %v1254 = vunpack.c.h.b16 %v929
  %v1255 = vunpack.c.l.b16 %v930
  %v1256 = vunpack.c.h.b16 %v930
  %v1257 = vunpack.c.l.b16 %v931
  %v1258 = vunpack.c.h.b16 %v931
  %v1259 = vunpack.c.l.b16 %v932
  %v1260 = vunpack.c.h.b16 %v932
  %v1261 = vunpack.c.l.b16 %v933
  %v1262 = vunpack.c.h.b16 %v933
  %v1263 = vunpack.c.l.b16 %v934
  %v1264 = vunpack.c.h.b16 %v934
  %v1265 = vunpack.c.l.b16 %v935
  %v1266 = vunpack.c.h.b16 %v935
  %v1267 = vunpack.c.l.b16 %v936
  %v1268 = vunpack.c.h.b16 %v936
  %v1269 = vunpack.c.l.b16 %v937
  %v1270 = vunpack.c.h.b16 %v937
  %v1271 = vunpack.c.l.b16 %v938
  %v1272 = vunpack.c.h.b16 %v938
  %v1273 = vunpack.c.l.b16 %v939
  %v1274 = vunpack.c.h.b16 %v939
  %v1275 = vunpack.c.l.b16 %v940
  %v1276 = vunpack.c.h.b16 %v940
  %v1277 = vunpack.c.l.b16 %v941
  %v1278 = vunpack.c.h.b16 %v941
  %v1279 = vunpack.c.l.b16 %v942
  %v1280 = vunpack.c.h.b16 %v942
  %v1281 = vunpack.c.l.b16 %v943
  %v1282 = vunpack.c.h.b16 %v943
  %v1283 = vunpack.c.l.b16 %v944
  %v1284 = vunpack.c.h.b16 %v944
  %v1285 = vunpack.c.l.b16 %v945
  %v1286 = vunpack.c.h.b16 %v945
  %v1287 = vunpack.c.l.b16 %v946
  %v1288 = vunpack.c.h.b16 %v946
  %v1289 = vunpack.c.l.b16 %v947
  %v1290 = vunpack.c.h.b16 %v947
  %v1291 = vunpack.c.l.b16 %v948
  %v1292 = vunpack.c.h.b16 %v948
  %v1293 = vunpack.c.l.b16 %v949
  %v1294 = vunpack.c.h.b16 %v949
  %v1295 = vunpack.c.l.b16 %v950
  %v1296 = vunpack.c.h.b16 %v950
  %v1297 = vunpack.c.l.b16 %v951
  %v1298 = vunpack.c.h.b16 %v951
  %v1299 = vunpack.c.l.b16 %v952
  %v1300 = vunpack.c.h.b16 %v952
  %v1301 = vunpack.c.l.b16 %v953
  %v1302 = vunpack.c.h.b16 %v953
  %v1303 = vunpack.c.l.b16 %v954
  %v1304 = vunpack.c.h.b16 %v954
  %v1305 = vunpack.c.l.b16 %v955
  %v1306 = vunpack.c.h.b16 %v955
  %v1307 = vunpack.c.l.b16 %v956
  %v1308 = vunpack.c.h.b16 %v956
  %v1309 = vunpack.c.l.b16 %v957
  %v1310 = vunpack.c.h.b16 %v957
  %v1311 = vunpack.c.l.b16 %v958
  %v1312 = vunpack.c.h.b16 %v958
  %v1313 = vunpack.c.l.b16 %v959
  %v1314 = vunpack.c.h.b16 %v959
  %v1315 = vunpack.c.l.b16 %v960
  %v1316 = vunpack.c.h.b16 %v960
  %v1317 = vunpack.c.l.b16 %v961
  %v1318 = vunpack.c.h.b16 %v961
  %v1319 = vunpack.c.l.b16 %v962
  %v1320 = vunpack.c.h.b16 %v962
  %v1321 = vunpack.c.l.b16 %v963
  %v1322 = vunpack.c.h.b16 %v963
  %v1323 = vunpack.c.l.b16 %v964
  %v1324 = vunpack.c.h.b16 %v964
  %v1325 = vunpack.c.l.b16 %v965
  %v1326 = vunpack.c.h.b16 %v965
  %v1327 = vunpack.c.l.b16 %v966
  %v1328 = vunpack.c.h.b16 %v966
  %v1329 = vunpack.c.l.b16 %v967
  %v1330 = vunpack.c.h.b16 %v967
  %v1331 = vunpack.c.l.b16 %v968
  %v1332 = vunpack.c.h.b16 %v968
  %v1333 = vunpack.c.l.b16 %v969
  %v1334 = vunpack.c.h.b16 %v969
  %v1335 = vunpack.c.l.b16 %v970
  %v1336 = vunpack.c.h.b16 %v970
  %v1337 = vunpack.c.l.b16 %v971
  %v1338 = vunpack.c.h.b16 %v971
  %v1339 = vunpack.c.l.b16 %v972
  %v1340 = vunpack.c.h.b16 %v972
  %v1341 = vunpack.c.l.b16 %v973
  %v1342 = vunpack.c.h.b16 %v973
  %v1343 = vunpack.c.l.b16 %v974
  %v1344 = vunpack.c.h.b16 %v974
  %v1345 = vunpack.c.l.b16 %v975
  %v1346 = vunpack.c.h.b16 %v975
  %v1347 = vunpack.c.l.b16 %v976
  %v1348 = vunpack.c.h.b16 %v976
  %v1349 = vunpack.c.l.b16 %v977
  %v1350 = vunpack.c.h.b16 %v977
  %v1351 = vunpack.c.l.b16 %v978
  %v1352 = vunpack.c.h.b16 %v978
  %v1353 = vunpack.c.l.b16 %v979
  %v1354 = vunpack.c.h.b16 %v979
  %v1355 = vunpack.c.l.b16 %v980
  %v1356 = vunpack.c.h.b16 %v980
  %v1357 = vunpack.c.l.b16 %v981
  %v1358 = vunpack.c.h.b16 %v981
  %v1359 = vunpack.c.l.b16 %v982
  %v1360 = vunpack.c.h.b16 %v982
  %v1361 = vunpack.c.l.b16 %v983
  %v1362 = vunpack.c.h.b16 %v983
  %v1363 = vunpack.c.l.b16 %v984
  %v1364 = vunpack.c.h.b16 %v984
  %v1365 = vunpack.c.l.b16 %v985
  %v1366 = vunpack.c.h.b16 %v985
  %v1367 = vunpack.c.l.b16 %v986
  %v1368 = vunpack.c.h.b16 %v986
  %v1369 = vunpack.c.l.b16 %v987
  %v1370 = vunpack.c.h.b16 %v987
  %v1371 = vunpack.c.l.b16 %v988
  %v1372 = vunpack.c.h.b16 %v988
  %v1373 = vunpack.c.l.b16 %v989
  %v1374 = vunpack.c.h.b16 %v989
  %v1375 = vunpack.c.l.b16 %v990
  %v1376 = vunpack.c.h.b16 %v990
  %v1377 = vunpack.c.l.b16 %v991
  %v1378 = vunpack.c.h.b16 %v991
  %v1379 = vunpack.c.l.b16 %v992
  %v1380 = vunpack.c.h.b16 %v992
  %v1381 = vunpack.c.l.b16 %v993
  %v1382 = vunpack.c.h.b16 %v993
  %v1383 = vunpack.c.l.b16 %v994
  %v1384 = vunpack.c.h.b16 %v994
  %v1385 = vunpack.c.l.b16 %v995
  %v1386 = vunpack.c.h.b16 %v995
  %v1387 = vunpack.c.l.b16 %v996
  %v1388 = vunpack.c.h.b16 %v996
  %v1389 = vunpack.c.l.b16 %v997
  %v1390 = vunpack.c.h.b16 %v997
  %v1391 = vunpack.c.l.b16 %v998
  %v1392 = vunpack.c.h.b16 %v998
  %v1393 = vunpack.c.l.b16 %v999
  %v1394 = vunpack.c.h.b16 %v999
  %v1395 = vunpack.c.l.b16 %v1000
  %v1396 = vunpack.c.h.b16 %v1000
  %v1397 = vpack.c.b16 %v1143, %v1141
  %v1398 = vpack.c.b16 %v1144, %v1142
  %v1399 = vpack.c.b16 %v1147, %v1145
  %v1400 = vpack.c.b16 %v1148, %v1146
  %v1401 = vpack.c.b16 %v1151, %v1149
  %v1402 = vpack.c.b16 %v1152, %v1150
  %v1403 = vpack.c.b16 %v1155, %v1153
  %v1404 = vpack.c.b16 %v1156, %v1154
  %v1405 = vpack.c.b16 %v1159, %v1157
  %v1406 = vpack.c.b16 %v1160, %v1158
  %v1407 = vpack.c.b16 %v1163, %v1161
  %v1408 = vpack.c.b16 %v1164, %v1162
  %v1409 = vpack.c.b16 %v1167, %v1165
  %v1410 = vpack.c.b16 %v1168, %v1166
  %v1411 = vpack.c.b16 %v1171, %v1169
  %v1412 = vpack.c.b16 %v1172, %v1170
  %v1413 = vpack.c.b16 %v1175, %v1173
  %v1414 = vpack.c.b16 %v1176, %v1174
  %v1415 = vpack.c.b16 %v1179, %v1177
  %v1416 = vpack.c.b16 %v1180, %v1178
  %v1417 = vpack.c.b16 %v1183, %v1181
  %v1418 = vpack.c.b16 %v1184, %v1182
  %v1419 = vpack.c.b16 %v1187, %v1185
  %v1420 = vpack.c.b16 %v1188, %v1186
  %v1421 = vpack.c.b16 %v1191, %v1189
  %v1422 = vpack.c.b16 %v1192, %v1190
  %v1423 = vpack.c.b16 %v1195, %v1193
  %v1424 = vpack.c.b16 %v1196, %v1194
  %v1425 = vpack.c.b16 %v1199, %v1197
  %v1426 = vpack.c.b16 %v1200, %v1198
  %v1427 = vpack.c.b16 %v1203, %v1201
  %v1428 = vpack.c.b16 %v1204, %v1202
  %v1429 = vpack.c.b16 %v1207, %v1205
  %v1430 = vpack.c.b16 %v1208, %v1206
  %v1431 = vpack.c.b16 %v1211, %v1209
  %v1432 = vpack.c.b16 %v1212, %v1210
  %v1433 = vpack.c.b16 %v1215, %v1213
  %v1434 = vpack.c.b16 %v1216, %v1214
  %v1435 = vpack.c.b16 %v1219, %v1217
  %v1436 = vpack.c.b16 %v1220, %v1218
  %v1437 = vpack.c.b16 %v1223, %v1221
  %v1438 = vpack.c.b16 %v1224, %v1222
  %v1439 = vpack.c.b16 %v1227, %v1225
  %v1440 = vpack.c.b16 %v1228, %v1226
  %v1441 = vpack.c.b16 %v1231, %v1229
  %v1442 = vpack.c.b16 %v1232, %v1230
  %v1443 = vpack.c.b16 %v1235, %v1233
  %v1444 = vpack.c.b16 %v1236, %v1234
  %v1445 = vpack.c.b16 %v1239, %v1237
  %v1446 = vpack.c.b16 %v1240, %v1238
  %v1447 = vpack.c.b16 %v1243, %v1241
  %v1448 = vpack.c.b16 %v1244, %v1242
  %v1449 = vpack.c.b16 %v1247, %v1245
  %v1450 = vpack.c.b16 %v1248, %v1246
  %v1451 = vpack.c.b16 %v1251, %v1249
  %v1452 = vpack.c.b16 %v1252, %v1250
  %v1453 = vpack.c.b16 %v1255, %v1253
  %v1454 = vpack.c.b16 %v1256, %v1254
  %v1455 = vpack.c.b16 %v1259, %v1257
  %v1456 = vpack.c.b16 %v1260, %v1258
  %v1457 = vpack.c.b16 %v1263, %v1261
  %v1458 = vpack.c.b16 %v1264, %v1262
  %v1459 = vpack.c.b16 %v1267, %v1265
  %v1460 = vpack.c.b16 %v1268, %v1266
  %v1461 = vpack.c.b16 %v1271, %v1269
  %v1462 = vpack.c.b16 %v1272, %v1270
  %v1463 = vpack.c.b16 %v1275, %v1273
  %v1464 = vpack.c.b16 %v1276, %v1274
  %v1465 = vpack.c.b16 %v1279, %v1277
  %v1466 = vpack.c.b16 %v1280, %v1278
  %v1467 = vpack.c.b16 %v1283, %v1281
  %v1468 = vpack.c.b16 %v1284, %v1282
  %v1469 = vpack.c.b16 %v1287, %v1285
  %v1470 = vpack.c.b16 %v1288, %v1286
  %v1471 = vpack.c.b16 %v1291, %v1289
  %v1472 = vpack.c.b16 %v1292, %v1290
  %v1473 = vpack.c.b16 %v1295, %v1293
  %v1474 = vpack.c.b16 %v1296, %v1294
  %v1475 = vpack.c.b16 %v1299, %v1297
  %v1476 = vpack.c.b16 %v1300, %v1298
  %v1477 = vpack.c.b16 %v1303, %v1301
  %v1478 = vpack.c.b16 %v1304, %v1302
  %v1479 = vpack.c.b16 %v1307, %v1305
  %v1480 = vpack.c.b16 %v1308, %v1306
  %v1481 = vpack.c.b16 %v1311, %v1309
  %v1482 = vpack.c.b16 %v1312, %v1310
  %v1483 = vpack.c.b16 %v1315, %v1313
  %v1484 = vpack.c.b16 %v1316, %v1314
  %v1485 = vpack.c.b16 %v1319, %v1317
  %v1486 = vpack.c.b16 %v1320, %v1318
  %v1487 = vpack.c.b16 %v1323, %v1321
  %v1488 = vpack.c.b16 %v1324, %v1322
  %v1489 = vpack.c.b16 %v1327, %v1325
  %v1490 = vpack.c.b16 %v1328, %v1326
  %v1491 = vpack.c.b16 %v1331, %v1329
  %v1492 = vpack.c.b16 %v1332, %v1330
  %v1493 = vpack.c.b16 %v1335, %v1333
  %v1494 = vpack.c.b16 %v1336, %v1334
  %v1495 = vpack.c.b16 %v1339, %v1337
  %v1496 = vpack.c.b16 %v1340, %v1338
  %v1497 = vpack.c.b16 %v1343, %v1341
  %v1498 = vpack.c.b16 %v1344, %v1342
  %v1499 = vpack.c.b16 %v1347, %v1345
  %v1500 = vpack.c.b16 %v1348, %v1346
  %v1501 = vpack.c.b16 %v1351, %v1349
  %v1502 = vpack.c.b16 %v1352, %v1350
  %v1503 = vpack.c.b16 %v1355, %v1353
  %v1504 = vpack.c.b16 %v1356, %v1354
  %v1505 = vpack.c.b16 %v1359, %v1357
  %v1506 = vpack.c.b16 %v1360, %v1358
  %v1507 = vpack.c.b16 %v1363, %v1361
  %v1508 = vpack.c.b16 %v1364, %v1362
  %v1509 = vpack.c.b16 %v1367, %v1365
  %v1510 = vpack.c.b16 %v1368, %v1366
  %v1511 = vpack.c.b16 %v1371, %v1369
  %v1512 = vpack.c.b16 %v1372, %v1370
  %v1513 = vpack.c.b16 %v1375, %v1373
  %v1514 = vpack.c.b16 %v1376, %v1374
  %v1515 = vpack.c.b16 %v1379, %v1377
  %v1516 = vpack.c.b16 %v1380, %v1378
  %v1517 = vpack.c.b16 %v1383, %v1381
  %v1518 = vpack.c.b16 %v1384, %v1382
  %v1519 = vpack.c.b16 %v1387, %v1385
  %v1520 = vpack.c.b16 %v1388, %v1386
  %v1521 = vpack.c.b16 %v1391, %v1389
  %v1522 = vpack.c.b16 %v1392, %v1390
  %v1523 = vpack.c.b16 %v1395, %v1393
  %v1524 = vpack.c.b16 %v1396, %v1394
  %1653 = vmatprep.subr.bf16.mxu0 %v1398
  %1654 = vmatpush1.bf16.msra.mxu0 %v1397
  %1655 = vmatprep.subr.bf16.mxu0 %v1400
  %1656 = vmatpush1.bf16.msra.mxu0 %v1399
  %1657 = vmatprep.subr.bf16.mxu0 %v1402
  %1658 = vmatpush1.bf16.msra.mxu0 %v1401
  %1659 = vmatprep.subr.bf16.mxu0 %v1404
  %1660 = vmatpush1.bf16.msra.mxu0 %v1403
  %1661 = vmatprep.subr.bf16.mxu0 %v1406
  %1662 = vmatpush1.bf16.msra.mxu0 %v1405
  %1663 = vmatprep.subr.bf16.mxu0 %v1408
  %1664 = vmatpush1.bf16.msra.mxu0 %v1407
  %1665 = vmatprep.subr.bf16.mxu0 %v1410
  %1666 = vmatpush1.bf16.msra.mxu0 %v1409
  %1667 = vmatprep.subr.bf16.mxu0 %v1412
  %1668 = vmatpush1.bf16.msra.mxu0 %v1411
  %1669 = vmatprep.subr.bf16.mxu0 %v1414
  %1670 = vmatpush1.bf16.msra.mxu0 %v1413
  %1671 = vmatprep.subr.bf16.mxu0 %v1416
  %1672 = vmatpush1.bf16.msra.mxu0 %v1415
  %1673 = vmatprep.subr.bf16.mxu0 %v1418
  %1674 = vmatpush1.bf16.msra.mxu0 %v1417
  %1675 = vmatprep.subr.bf16.mxu0 %v1420
  %1676 = vmatpush1.bf16.msra.mxu0 %v1419
  %1677 = vmatprep.subr.bf16.mxu0 %v1422
  %1678 = vmatpush1.bf16.msra.mxu0 %v1421
  %1679 = vmatprep.subr.bf16.mxu0 %v1424
  %1680 = vmatpush1.bf16.msra.mxu0 %v1423
  %1681 = vmatprep.subr.bf16.mxu0 %v1426
  %1682 = vmatpush1.bf16.msra.mxu0 %v1425
  %1683 = vmatprep.subr.bf16.mxu0 %v1428
  %1684 = vmatpush1.bf16.msra.mxu0 %v1427
  %1685 = vmatprep.mubr.bf16.mxu0 %v842
  %1686 = vmatmul.mubr.bf16.gmra.mrb[0].mxu0 %v841
  %v1687 = vpop.f32.mrb[0].mxu0
  %v1688 = vadd.f32 %v1006, %v1687
  %v1689 = vpop.f32.mrb[0].mxu0
  %v1690 = vadd.f32 %v1010, %v1689
  %v1691 = vpop.f32.mrb[0].mxu0
  %v1692 = vadd.f32 %v1006, %v1691
  %v1693 = vpop.f32.mrb[0].mxu0
  %v1694 = vadd.f32 %v1010, %v1693
  %1695 = vmatprep.mubr.bf16.mxu0 %v850
  %1696 = vmatmul.mubr.bf16.gmra.mrb[0].mxu0 %v849
  %v1697 = vpop.f32.mrb[0].mxu0
  %v1698 = vadd.f32 %v1006, %v1697
  %v1699 = vpop.f32.mrb[0].mxu0
  %v1700 = vadd.f32 %v1010, %v1699
  %v1701 = vpop.f32.mrb[0].mxu0
  %v1702 = vadd.f32 %v1006, %v1701
  %v1703 = vpop.f32.mrb[0].mxu0
  %v1704 = vadd.f32 %v1010, %v1703
  %1705 = vmatprep.mubr.bf16.mxu0 %v858
  %1706 = vmatmul.mubr.bf16.gmra.mrb[0].mxu0 %v857
  %v1707 = vpop.f32.mrb[0].mxu0
  %v1708 = vadd.f32 %v1006, %v1707
  %v1709 = vpop.f32.mrb[0].mxu0
  %v1710 = vadd.f32 %v1010, %v1709
  %v1711 = vpop.f32.mrb[0].mxu0
  %v1712 = vadd.f32 %v1006, %v1711
  %v1713 = vpop.f32.mrb[0].mxu0
  %v1714 = vadd.f32 %v1010, %v1713
  %1715 = vmatprep.mubr.bf16.mxu0 %v866
  %1716 = vmatmul.mubr.bf16.gmra.mrb[0].mxu0 %v865
  %v1717 = vpop.f32.mrb[0].mxu0
  %v1718 = vadd.f32 %v1006, %v1717
  %v1719 = vpop.f32.mrb[0].mxu0
  %v1720 = vadd.f32 %v1010, %v1719
  %v1721 = vpop.f32.mrb[0].mxu0
  %v1722 = vadd.f32 %v1006, %v1721
  %v1723 = vpop.f32.mrb[0].mxu0
  %v1724 = vadd.f32 %v1010, %v1723
  %1725 = vdwg.mxu0
  %1726 = vmatprep.subr.bf16.mxu0 %v1430
  %1727 = vmatpush1.bf16.msra.mxu0 %v1429
  %1728 = vmatprep.subr.bf16.mxu0 %v1432
  %1729 = vmatpush1.bf16.msra.mxu0 %v1431
  %1730 = vmatprep.subr.bf16.mxu0 %v1434
  %1731 = vmatpush1.bf16.msra.mxu0 %v1433
  %1732 = vmatprep.subr.bf16.mxu0 %v1436
  %1733 = vmatpush1.bf16.msra.mxu0 %v1435
  %1734 = vmatprep.subr.bf16.mxu0 %v1438
  %1735 = vmatpush1.bf16.msra.mxu0 %v1437
  %1736 = vmatprep.subr.bf16.mxu0 %v1440
  %1737 = vmatpush1.bf16.msra.mxu0 %v1439
  %1738 = vmatprep.subr.bf16.mxu0 %v1442
  %1739 = vmatpush1.bf16.msra.mxu0 %v1441
  %1740 = vmatprep.subr.bf16.mxu0 %v1444
  %1741 = vmatpush1.bf16.msra.mxu0 %v1443
  %1742 = vmatprep.subr.bf16.mxu0 %v1446
  %1743 = vmatpush1.bf16.msra.mxu0 %v1445
  %1744 = vmatprep.subr.bf16.mxu0 %v1448
  %1745 = vmatpush1.bf16.msra.mxu0 %v1447
  %1746 = vmatprep.subr.bf16.mxu0 %v1450
  %1747 = vmatpush1.bf16.msra.mxu0 %v1449
  %1748 = vmatprep.subr.bf16.mxu0 %v1452
  %1749 = vmatpush1.bf16.msra.mxu0 %v1451
  %1750 = vmatprep.subr.bf16.mxu0 %v1454
  %1751 = vmatpush1.bf16.msra.mxu0 %v1453
  %1752 = vmatprep.subr.bf16.mxu0 %v1456
  %1753 = vmatpush1.bf16.msra.mxu0 %v1455
  %1754 = vmatprep.subr.bf16.mxu0 %v1458
  %1755 = vmatpush1.bf16.msra.mxu0 %v1457
  %1756 = vmatprep.subr.bf16.mxu0 %v1460
  %1757 = vmatpush1.bf16.msra.mxu0 %v1459
  %1758 = vmatprep.mubr.bf16.mxu0 %v844
  %1759 = vmatmul.mubr.bf16.gmra.mrb[0].mxu0 %v843
  %v1760 = vpop.f32.mrb[0].mxu0
  %v1761 = vadd.f32 %v1688, %v1760
  %v1762 = vpop.f32.mrb[0].mxu0
  %v1763 = vadd.f32 %v1690, %v1762
  %v1764 = vpop.f32.mrb[0].mxu0
  %v1765 = vadd.f32 %v1692, %v1764
  %v1766 = vpop.f32.mrb[0].mxu0
  %v1767 = vadd.f32 %v1694, %v1766
  %1768 = vmatprep.mubr.bf16.mxu0 %v852
  %1769 = vmatmul.mubr.bf16.gmra.mrb[0].mxu0 %v851
  %v1770 = vpop.f32.mrb[0].mxu0
  %v1771 = vadd.f32 %v1698, %v1770
  %v1772 = vpop.f32.mrb[0].mxu0
  %v1773 = vadd.f32 %v1700, %v1772
  %v1774 = vpop.f32.mrb[0].mxu0
  %v1775 = vadd.f32 %v1702, %v1774
  %v1776 = vpop.f32.mrb[0].mxu0
  %v1777 = vadd.f32 %v1704, %v1776
  %1778 = vmatprep.mubr.bf16.mxu0 %v860
  %1779 = vmatmul.mubr.bf16.gmra.mrb[0].mxu0 %v859
  %v1780 = vpop.f32.mrb[0].mxu0
  %v1781 = vadd.f32 %v1708, %v1780
  %v1782 = vpop.f32.mrb[0].mxu0
  %v1783 = vadd.f32 %v1710, %v1782
  %v1784 = vpop.f32.mrb[0].mxu0
  %v1785 = vadd.f32 %v1712, %v1784
  %v1786 = vpop.f32.mrb[0].mxu0
  %v1787 = vadd.f32 %v1714, %v1786
  %1788 = vmatprep.mubr.bf16.mxu0 %v868
  %1789 = vmatmul.mubr.bf16.gmra.mrb[0].mxu0 %v867
  %v1790 = vpop.f32.mrb[0].mxu0
  %v1791 = vadd.f32 %v1718, %v1790
  %v1792 = vpop.f32.mrb[0].mxu0
  %v1793 = vadd.f32 %v1720, %v1792
  %v1794 = vpop.f32.mrb[0].mxu0
  %v1795 = vadd.f32 %v1722, %v1794
  %v1796 = vpop.f32.mrb[0].mxu0
  %v1797 = vadd.f32 %v1724, %v1796
  %1798 = vdwg.mxu0
  %1799 = vmatprep.subr.bf16.mxu0 %v1462
  %1800 = vmatpush1.bf16.msra.mxu0 %v1461
  %1801 = vmatprep.subr.bf16.mxu0 %v1464
  %1802 = vmatpush1.bf16.msra.mxu0 %v1463
  %1803 = vmatprep.subr.bf16.mxu0 %v1466
  %1804 = vmatpush1.bf16.msra.mxu0 %v1465
  %1805 = vmatprep.subr.bf16.mxu0 %v1468
  %1806 = vmatpush1.bf16.msra.mxu0 %v1467
  %1807 = vmatprep.subr.bf16.mxu0 %v1470
  %1808 = vmatpush1.bf16.msra.mxu0 %v1469
  %1809 = vmatprep.subr.bf16.mxu0 %v1472
  %1810 = vmatpush1.bf16.msra.mxu0 %v1471
  %1811 = vmatprep.subr.bf16.mxu0 %v1474
  %1812 = vmatpush1.bf16.msra.mxu0 %v1473
  %1813 = vmatprep.subr.bf16.mxu0 %v1476
  %1814 = vmatpush1.bf16.msra.mxu0 %v1475
  %1815 = vmatprep.subr.bf16.mxu0 %v1478
  %1816 = vmatpush1.bf16.msra.mxu0 %v1477
  %1817 = vmatprep.subr.bf16.mxu0 %v1480
  %1818 = vmatpush1.bf16.msra.mxu0 %v1479
  %1819 = vmatprep.subr.bf16.mxu0 %v1482
  %1820 = vmatpush1.bf16.msra.mxu0 %v1481
  %1821 = vmatprep.subr.bf16.mxu0 %v1484
  %1822 = vmatpush1.bf16.msra.mxu0 %v1483
  %1823 = vmatprep.subr.bf16.mxu0 %v1486
  %1824 = vmatpush1.bf16.msra.mxu0 %v1485
  %1825 = vmatprep.subr.bf16.mxu0 %v1488
  %1826 = vmatpush1.bf16.msra.mxu0 %v1487
  %1827 = vmatprep.subr.bf16.mxu0 %v1490
  %1828 = vmatpush1.bf16.msra.mxu0 %v1489
  %1829 = vmatprep.subr.bf16.mxu0 %v1492
  %1830 = vmatpush1.bf16.msra.mxu0 %v1491
  %1831 = vmatprep.mubr.bf16.mxu0 %v846
  %1832 = vmatmul.mubr.bf16.gmra.mrb[0].mxu0 %v845
  %v1833 = vpop.f32.mrb[0].mxu0
  %v1834 = vadd.f32 %v1761, %v1833
  %v1835 = vpop.f32.mrb[0].mxu0
  %v1836 = vadd.f32 %v1763, %v1835
  %v1837 = vpop.f32.mrb[0].mxu0
  %v1838 = vadd.f32 %v1765, %v1837
  %v1839 = vpop.f32.mrb[0].mxu0
  %v1840 = vadd.f32 %v1767, %v1839
  %1841 = vmatprep.mubr.bf16.mxu0 %v854
  %1842 = vmatmul.mubr.bf16.gmra.mrb[0].mxu0 %v853
  %v1843 = vpop.f32.mrb[0].mxu0
  %v1844 = vadd.f32 %v1771, %v1843
  %v1845 = vpop.f32.mrb[0].mxu0
  %v1846 = vadd.f32 %v1773, %v1845
  %v1847 = vpop.f32.mrb[0].mxu0
  %v1848 = vadd.f32 %v1775, %v1847
  %v1849 = vpop.f32.mrb[0].mxu0
  %v1850 = vadd.f32 %v1777, %v1849
  %1851 = vmatprep.mubr.bf16.mxu0 %v862
  %1852 = vmatmul.mubr.bf16.gmra.mrb[0].mxu0 %v861
  %v1853 = vpop.f32.mrb[0].mxu0
  %v1854 = vadd.f32 %v1781, %v1853
  %v1855 = vpop.f32.mrb[0].mxu0
  %v1856 = vadd.f32 %v1783, %v1855
  %v1857 = vpop.f32.mrb[0].mxu0
  %v1858 = vadd.f32 %v1785, %v1857
  %v1859 = vpop.f32.mrb[0].mxu0
  %v1860 = vadd.f32 %v1787, %v1859
  %1861 = vmatprep.mubr.bf16.mxu0 %v870
  %1862 = vmatmul.mubr.bf16.gmra.mrb[0].mxu0 %v869
  %v1863 = vpop.f32.mrb[0].mxu0
  %v1864 = vadd.f32 %v1791, %v1863
  %v1865 = vpop.f32.mrb[0].mxu0
  %v1866 = vadd.f32 %v1793, %v1865
  %v1867 = vpop.f32.mrb[0].mxu0
  %v1868 = vadd.f32 %v1795, %v1867
  %v1869 = vpop.f32.mrb[0].mxu0
  %v1870 = vadd.f32 %v1797, %v1869
  %1871 = vdwg.mxu0
  %1872 = vmatprep.subr.bf16.mxu0 %v1494
  %1873 = vmatpush1.bf16.msra.mxu0 %v1493
  %1874 = vmatprep.subr.bf16.mxu0 %v1496
  %1875 = vmatpush1.bf16.msra.mxu0 %v1495
  %1876 = vmatprep.subr.bf16.mxu0 %v1498
  %1877 = vmatpush1.bf16.msra.mxu0 %v1497
  %1878 = vmatprep.subr.bf16.mxu0 %v1500
  %1879 = vmatpush1.bf16.msra.mxu0 %v1499
  %1880 = vmatprep.subr.bf16.mxu0 %v1502
  %1881 = vmatpush1.bf16.msra.mxu0 %v1501
  %1882 = vmatprep.subr.bf16.mxu0 %v1504
  %1883 = vmatpush1.bf16.msra.mxu0 %v1503
  %1884 = vmatprep.subr.bf16.mxu0 %v1506
  %1885 = vmatpush1.bf16.msra.mxu0 %v1505
  %1886 = vmatprep.subr.bf16.mxu0 %v1508
  %1887 = vmatpush1.bf16.msra.mxu0 %v1507
  %1888 = vmatprep.subr.bf16.mxu0 %v1510
  %1889 = vmatpush1.bf16.msra.mxu0 %v1509
  %1890 = vmatprep.subr.bf16.mxu0 %v1512
  %1891 = vmatpush1.bf16.msra.mxu0 %v1511
  %1892 = vmatprep.subr.bf16.mxu0 %v1514
  %1893 = vmatpush1.bf16.msra.mxu0 %v1513
  %1894 = vmatprep.subr.bf16.mxu0 %v1516
  %1895 = vmatpush1.bf16.msra.mxu0 %v1515
  %1896 = vmatprep.subr.bf16.mxu0 %v1518
  %1897 = vmatpush1.bf16.msra.mxu0 %v1517
  %1898 = vmatprep.subr.bf16.mxu0 %v1520
  %1899 = vmatpush1.bf16.msra.mxu0 %v1519
  %1900 = vmatprep.subr.bf16.mxu0 %v1522
  %1901 = vmatpush1.bf16.msra.mxu0 %v1521
  %1902 = vmatprep.subr.bf16.mxu0 %v1524
  %1903 = vmatpush1.bf16.msra.mxu0 %v1523
  %1904 = vmatprep.mubr.bf16.mxu0 %v848
  %1905 = vmatmul.mubr.bf16.gmra.mrb[0].mxu0 %v847
  %v1906 = vpop.f32.mrb[0].mxu0
  %v1907 = vadd.f32 %v1834, %v1906
  %v1908 = vpop.f32.mrb[0].mxu0
  %v1909 = vadd.f32 %v1836, %v1908
  %v1910 = vpop.f32.mrb[0].mxu0
  %v1911 = vadd.f32 %v1838, %v1910
  %v1912 = vpop.f32.mrb[0].mxu0
  %v1913 = vadd.f32 %v1840, %v1912
  %1914 = vmatprep.mubr.bf16.mxu0 %v856
  %1915 = vmatmul.mubr.bf16.gmra.mrb[0].mxu0 %v855
  %v1916 = vpop.f32.mrb[0].mxu0
  %v1917 = vadd.f32 %v1844, %v1916
  %v1918 = vpop.f32.mrb[0].mxu0
  %v1919 = vadd.f32 %v1846, %v1918
  %v1920 = vpop.f32.mrb[0].mxu0
  %v1921 = vadd.f32 %v1848, %v1920
  %v1922 = vpop.f32.mrb[0].mxu0
  %v1923 = vadd.f32 %v1850, %v1922
  %1924 = vmatprep.mubr.bf16.mxu0 %v864
  %1925 = vmatmul.mubr.bf16.gmra.mrb[0].mxu0 %v863
  %v1926 = vpop.f32.mrb[0].mxu0
  %v1927 = vadd.f32 %v1854, %v1926
  %v1928 = vpop.f32.mrb[0].mxu0
  %v1929 = vadd.f32 %v1856, %v1928
  %v1930 = vpop.f32.mrb[0].mxu0
  %v1931 = vadd.f32 %v1858, %v1930
  %v1932 = vpop.f32.mrb[0].mxu0
  %v1933 = vadd.f32 %v1860, %v1932
  %1934 = vmatprep.mubr.bf16.mxu0 %v872
  %1935 = vmatmul.mubr.bf16.gmra.mrb[0].mxu0 %v871
  %v1936 = vpop.f32.mrb[0].mxu0
  %v1937 = vadd.f32 %v1864, %v1936
  %v1938 = vpop.f32.mrb[0].mxu0
  %v1939 = vadd.f32 %v1866, %v1938
  %v1940 = vpop.f32.mrb[0].mxu0
  %v1941 = vadd.f32 %v1868, %v1940
  %v1942 = vpop.f32.mrb[0].mxu0
  %v1943 = vadd.f32 %v1870, %v1942
  %1944 = vdwg.mxu0
  %v1945 = vmax.f32 %v1907, 0.0
  %v1946 = vmax.f32 %v1909, 0.0
  %v1947 = vmax.f32 %v1911, 0.0
  %v1948 = vmax.f32 %v1913, 0.0
  %v1949 = vmax.f32 %v1917, 0.0
  %v1950 = vmax.f32 %v1919, 0.0
  %v1951 = vmax.f32 %v1921, 0.0
  %v1952 = vmax.f32 %v1923, 0.0
  %v1953 = vmax.f32 %v1927, 0.0
  %v1954 = vmax.f32 %v1929, 0.0
  %v1955 = vmax.f32 %v1931, 0.0
  %v1956 = vmax.f32 %v1933, 0.0
  %v1957 = vmax.f32 %v1937, 0.0
  %v1958 = vmax.f32 %v1939, 0.0
  %v1959 = vmax.f32 %v1941, 0.0
  %v1960 = vmax.f32 %v1943, 0.0
  %v1961 = vpack.c.bf16 %v1947, %v1945
  %v1962 = vpack.c.bf16 %v1948, %v1946
  %v1963 = vpack.c.bf16 %v1951, %v1949
  %v1964 = vpack.c.bf16 %v1952, %v1950
  %v1965 = vpack.c.bf16 %v1955, %v1953
  %v1966 = vpack.c.bf16 %v1956, %v1954
  %v1967 = vpack.c.bf16 %v1959, %v1957
  %v1968 = vpack.c.bf16 %v1960, %v1958
  %v1969 = vld [vmem:[%s5] sm:$0xf]
  %v1970 = vld [vmem:[%s5 + $0x4] sm:$0xf]
  %v1971 = vld [vmem:[%s5 + $0x8] sm:$0xf]
  %v1972 = vld [vmem:[%s5 + $0xc] sm:$0xf]
  %v1973 = vld [vmem:[%s5 + $0x10] sm:$0xf]
  %v1974 = vld [vmem:[%s5 + $0x14] sm:$0xf]
  %v1975 = vld [vmem:[%s5 + $0x18] sm:$0xf]
  %v1976 = vld [vmem:[%s5 + $0x1c] sm:$0xf]
  %v1977 = vld [vmem:[%s5 + $0x20] sm:$0xf]
  %v1978 = vld [vmem:[%s5 + $0x24] sm:$0xf]
  %v1979 = vld [vmem:[%s5 + $0x28] sm:$0xf]
  %v1980 = vld [vmem:[%s5 + $0x2c] sm:$0xf]
  %v1981 = vld [vmem:[%s5 + $0x30] sm:$0xf]
  %v1982 = vld [vmem:[%s5 + $0x34] sm:$0xf]
  %v1983 = vld [vmem:[%s5 + $0x38] sm:$0xf]
  %v1984 = vld [vmem:[%s5 + $0x3c] sm:$0xf]
  %v1985 = vld [vmem:[%s5 + $0x40] sm:$0xf]
  %v1986 = vld [vmem:[%s5 + $0x44] sm:$0xf]
  %v1987 = vld [vmem:[%s5 + $0x48] sm:$0xf]
  %v1988 = vld [vmem:[%s5 + $0x4c] sm:$0xf]
  %v1989 = vld [vmem:[%s5 + $0x50] sm:$0xf]
  %v1990 = vld [vmem:[%s5 + $0x54] sm:$0xf]
  %v1991 = vld [vmem:[%s5 + $0x58] sm:$0xf]
  %v1992 = vld [vmem:[%s5 + $0x5c] sm:$0xf]
  %v1993 = vld [vmem:[%s5 + $0x60] sm:$0xf]
  %v1994 = vld [vmem:[%s5 + $0x64] sm:$0xf]
  %v1995 = vld [vmem:[%s5 + $0x68] sm:$0xf]
  %v1996 = vld [vmem:[%s5 + $0x6c] sm:$0xf]
  %v1997 = vld [vmem:[%s5 + $0x70] sm:$0xf]
  %v1998 = vld [vmem:[%s5 + $0x74] sm:$0xf]
  %v1999 = vld [vmem:[%s5 + $0x78] sm:$0xf]
  %v2000 = vld [vmem:[%s5 + $0x7c] sm:$0xf]
  %v2001 = vld [vmem:[%s6] sm:$0x1]
  %v2003 = vlaneseq
  %v2004 = vshrl.u32 %v2003, 7
  %v2005 = vsub.s32 0, %v2004
  %v2006 = vrot.slane %v2001, %v2005
  %v2040 = vunpack.c.l.b16 %v1969
  %v2041 = vunpack.c.l.b16 %v1970
  %v2042 = vunpack.c.l.b16 %v1971
  %v2043 = vunpack.c.l.b16 %v1972
  %v2044 = vunpack.c.l.b16 %v1973
  %v2045 = vunpack.c.l.b16 %v1974
  %v2046 = vunpack.c.l.b16 %v1975
  %v2047 = vunpack.c.l.b16 %v1976
  %v2048 = vunpack.c.l.b16 %v1977
  %v2049 = vunpack.c.l.b16 %v1978
  %v2050 = vunpack.c.l.b16 %v1979
  %v2051 = vunpack.c.l.b16 %v1980
  %v2052 = vunpack.c.l.b16 %v1981
  %v2053 = vunpack.c.l.b16 %v1982
  %v2054 = vunpack.c.l.b16 %v1983
  %v2055 = vunpack.c.l.b16 %v1984
  %v2056 = vunpack.c.l.b16 %v1985
  %v2057 = vunpack.c.l.b16 %v1986
  %v2058 = vunpack.c.l.b16 %v1987
  %v2059 = vunpack.c.l.b16 %v1988
  %v2060 = vunpack.c.l.b16 %v1989
  %v2061 = vunpack.c.l.b16 %v1990
  %v2062 = vunpack.c.l.b16 %v1991
  %v2063 = vunpack.c.l.b16 %v1992
  %v2064 = vunpack.c.l.b16 %v1993
  %v2065 = vunpack.c.l.b16 %v1994
  %v2066 = vunpack.c.l.b16 %v1995
  %v2067 = vunpack.c.l.b16 %v1996
  %v2068 = vunpack.c.l.b16 %v1997
  %v2069 = vunpack.c.l.b16 %v1998
  %v2070 = vunpack.c.l.b16 %v1999
  %v2071 = vunpack.c.l.b16 %v2000
  %v2072 = vpack.c.b16 %v2041, %v2040
  %v2073 = vpack.c.b16 %v2043, %v2042
  %v2074 = vpack.c.b16 %v2045, %v2044
  %v2075 = vpack.c.b16 %v2047, %v2046
  %v2076 = vpack.c.b16 %v2049, %v2048
  %v2077 = vpack.c.b16 %v2051, %v2050
  %v2078 = vpack.c.b16 %v2053, %v2052
  %v2079 = vpack.c.b16 %v2055, %v2054
  %v2080 = vpack.c.b16 %v2057, %v2056
  %v2081 = vpack.c.b16 %v2059, %v2058
  %v2082 = vpack.c.b16 %v2061, %v2060
  %v2083 = vpack.c.b16 %v2063, %v2062
  %v2084 = vpack.c.b16 %v2065, %v2064
  %v2085 = vpack.c.b16 %v2067, %v2066
  %v2086 = vpack.c.b16 %v2069, %v2068
  %v2087 = vpack.c.b16 %v2071, %v2070
  %2104 = vmatprep.subr.bf16.mxu0 0
  %2105 = vmatpush1.bf16.msra.mxu0 %v2072
  %2106 = vmatprep.subr.bf16.mxu0 0
  %2107 = vmatpush1.bf16.msra.mxu0 %v2073
  %2108 = vmatprep.subr.bf16.mxu0 0
  %2109 = vmatpush1.bf16.msra.mxu0 %v2074
  %2110 = vmatprep.subr.bf16.mxu0 0
  %2111 = vmatpush1.bf16.msra.mxu0 %v2075
  %2112 = vmatprep.subr.bf16.mxu0 0
  %2113 = vmatpush1.bf16.msra.mxu0 %v2076
  %2114 = vmatprep.subr.bf16.mxu0 0
  %2115 = vmatpush1.bf16.msra.mxu0 %v2077
  %2116 = vmatprep.subr.bf16.mxu0 0
  %2117 = vmatpush1.bf16.msra.mxu0 %v2078
  %2118 = vmatprep.subr.bf16.mxu0 0
  %2119 = vmatpush1.bf16.msra.mxu0 %v2079
  %2120 = vmatprep.subr.bf16.mxu0 0
  %2121 = vmatpush1.bf16.msra.mxu0 %v2080
  %2122 = vmatprep.subr.bf16.mxu0 0
  %2123 = vmatpush1.bf16.msra.mxu0 %v2081
  %2124 = vmatprep.subr.bf16.mxu0 0
  %2125 = vmatpush1.bf16.msra.mxu0 %v2082
  %2126 = vmatprep.subr.bf16.mxu0 0
  %2127 = vmatpush1.bf16.msra.mxu0 %v2083
  %2128 = vmatprep.subr.bf16.mxu0 0
  %2129 = vmatpush1.bf16.msra.mxu0 %v2084
  %2130 = vmatprep.subr.bf16.mxu0 0
  %2131 = vmatpush1.bf16.msra.mxu0 %v2085
  %2132 = vmatprep.subr.bf16.mxu0 0
  %2133 = vmatpush1.bf16.msra.mxu0 %v2086
  %2134 = vmatprep.subr.bf16.mxu0 0
  %2135 = vmatpush1.bf16.msra.mxu0 %v2087
  %2136 = vmatprep.mubr.bf16.mxu0 %v1962
  %2137 = vmatmul.mubr.bf16.gmra.mrb[0].mxu0 %v1961
  %v2138 = vpop.f32.mrb[0].mxu0
  %v2139 = vadd.f32 %v2006, %v2138
  %v2140 = vpop.f32.mrb[0].mxu0
  %v2141 = vpop.f32.mrb[0].mxu0
  %v2142 = vadd.f32 %v2006, %v2141
  %v2143 = vpop.f32.mrb[0].mxu0
  %2144 = vmatprep.mubr.bf16.mxu0 %v1964
  %2145 = vmatmul.mubr.bf16.gmra.mrb[0].mxu0 %v1963
  %v2146 = vpop.f32.mrb[0].mxu0
  %v2147 = vadd.f32 %v2006, %v2146
  %v2148 = vpop.f32.mrb[0].mxu0
  %v2149 = vpop.f32.mrb[0].mxu0
  %v2150 = vadd.f32 %v2006, %v2149
  %v2151 = vpop.f32.mrb[0].mxu0
  %2152 = vmatprep.mubr.bf16.mxu0 %v1966
  %2153 = vmatmul.mubr.bf16.gmra.mrb[0].mxu0 %v1965
  %v2154 = vpop.f32.mrb[0].mxu0
  %v2155 = vadd.f32 %v2006, %v2154
  %v2156 = vpop.f32.mrb[0].mxu0
  %v2157 = vpop.f32.mrb[0].mxu0
  %v2158 = vadd.f32 %v2006, %v2157
  %v2159 = vpop.f32.mrb[0].mxu0
  %2160 = vmatprep.mubr.bf16.mxu0 %v1968
  %2161 = vmatmul.mubr.bf16.gmra.mrb[0].mxu0 %v1967
  %v2162 = vpop.f32.mrb[0].mxu0
  %v2163 = vadd.f32 %v2006, %v2162
  %v2164 = vpop.f32.mrb[0].mxu0
  %v2165 = vpop.f32.mrb[0].mxu0
  %v2166 = vadd.f32 %v2006, %v2165
  %v2167 = vpop.f32.mrb[0].mxu0
  %2168 = vdwg.mxu0
  %2169 = vst [vmem:[%s7] sm:$0xff] %v2139
  %2170 = vst [vmem:[%s7 + $0x8] sm:$0xff] %v2142
  %2171 = vst [vmem:[%s7 + $0x10] sm:$0xff] %v2147
  %2172 = vst [vmem:[%s7 + $0x18] sm:$0xff] %v2150
  %2173 = vst [vmem:[%s7 + $0x20] sm:$0xff] %v2155
  %2174 = vst [vmem:[%s7 + $0x28] sm:$0xff] %v2158
  %2175 = vst [vmem:[%s7 + $0x30] sm:$0xff] %v2163
  %2176 = vst [vmem:[%s7 + $0x38] sm:$0xff] %v2166
  // Predicated region
  $region30: #{base_nn_forward.1} parent=0 // pred_check
    _
  $region31: #{base_nn_forward.1} parent=0 // pred_check_branch
    %2178 = sbr.rel (0) target = $region33
  $region32: #{base_nn_forward.1} parent=0 // pred_region
    _
  $region33: #{base_nn_forward.1} parent=0 // pred_fallthru
    _
  // Predicated region
  $region34: #{base_nn_forward.1} parent=0 // pred_check
    _
  $region35: #{base_nn_forward.1} parent=0 // pred_check_branch
    %2180 = sbr.rel (0) target = $region37
  $region36: #{base_nn_forward.1} parent=0 // pred_region
    _
  $region37: #{base_nn_forward.1} parent=0 // pred_fallthru
    _

</llo_original>
